<compile_context>
chip_gen: v7x
topology: tpu7x:2x2x1
jax: 0.10.0
libtpu: 0.0.40
codegen_flags: <defaults>
</compile_context>

<pallas_src>
import functools

import jax
import jax.numpy as jnp
from jax import lax
from jax.experimental import pallas as pl
from jax.experimental.pallas import tpu as pltpu

chunk_size = 256
n_embd = 384

NEG_INF = -1e30  # large finite negative instead of -inf (avoids inf arithmetic)


def _use_bf16_exp() -> bool:
    """bf16 EUP exists on v6e / v7x; keep f32 exp on v5e or unknown hardware."""
    try:
        kind = jax.devices()[0].device_kind.lower()
    except Exception:
        return False
    return ("v6" in kind) or ("v7" in kind)


def _rows_per_program(batch: int) -> int:
    """2-4 batch rows per program amortizes grid-step / MXU fill overhead
    (v5e/v6e) while keeping >=2 parallel grid entries for v7x's 2 TCs."""
    for bb in (4, 2, 1):
        if batch % bb == 0 and batch // bb >= 2:
            return bb
    return 1


# ----------------------------------------------------------------------------
# Fused kernel: packed QKV projection + head-batched causal attention + output
# projection + bias; one program per block of `bb` batch rows.
# ----------------------------------------------------------------------------
def _mha_fused_kernel(x_ref, wqkv_ref, wproj_ref, bias_ref, o_ref, *,
                      num_heads, head_size, bf16_exp):
    H, hs = num_heads, head_size
    bb, T, C = x_ref.shape
    D = H * hs

    # Cast activations to bf16 in VMEM (x arrives f32 -> no wrapper-side cast op).
    x = x_ref[...].reshape(bb * T, C).astype(jnp.bfloat16)
    wqkv = wqkv_ref[...]          # (C, 3*D) bf16, Q columns pre-scaled by hs**-0.5
    wproj = wproj_ref[...]        # (D, E)   bf16
    bias = bias_ref[...]          # (1, E)   f32

    # One packed, wide QKV projection for the whole (bb*T, C) slab.
    qkv = jnp.dot(x, wqkv, preferred_element_type=jnp.float32)    # (bb*T, 3*D) f32
    qkv = qkv.reshape(bb, T, 3 * D)

    # Causal mask built once per program.
    row = lax.broadcasted_iota(jnp.int32, (T, T), 0)
    col = lax.broadcasted_iota(jnp.int32, (T, T), 1)
    causal = (col <= row)[None, :, :]                              # (1, T, T)

    for b in range(bb):  # static unroll, bb <= 4
        qkv_b = qkv[b]                                             # (T, 3*D) f32
        # Head-major (H, T, hs) bf16 operands: one relayout per tensor instead
        # of H sub-vreg 16-lane column slices per head.
        q = jnp.transpose(qkv_b[:, 0 * D:1 * D].reshape(T, H, hs), (1, 0, 2)).astype(jnp.bfloat16)
        k = jnp.transpose(qkv_b[:, 1 * D:2 * D].reshape(T, H, hs), (1, 0, 2)).astype(jnp.bfloat16)
        v = jnp.transpose(qkv_b[:, 2 * D:3 * D].reshape(T, H, hs), (1, 0, 2)).astype(jnp.bfloat16)

        # Head-batched scores; contracts hs dims directly (no k.T materialization).
        scores = jnp.einsum('hqd,hkd->hqk', q, k,
                            preferred_element_type=jnp.float32)    # (H, T, T) f32
        scores = jnp.where(causal, scores, NEG_INF)

        # Numerically stable softmax: max/sum/reciprocal strictly f32,
        # exp optionally bf16 on v6e/v7x (bf16 EUP, ~2x rate, half footprint).
        m = jnp.max(scores, axis=-1, keepdims=True)
        su = scores - m
        if bf16_exp:
            e = jnp.exp(su.astype(jnp.bfloat16)).astype(jnp.float32)
        else:
            e = jnp.exp(su)
        s = jnp.sum(e, axis=-1, keepdims=True)
        p = (e * pl.reciprocal(s, approx=True)).astype(jnp.bfloat16)   # (H, T, T)

        # Head-batched P @ V -> (H, T, hs); relayout to head-concat (T, D) and
        # do the fused output projection (lane-dense E=384 store).
        head_out = jnp.einsum('hqk,hkd->hqd', p, v,
                              preferred_element_type=jnp.float32)
        head_cat = jnp.transpose(head_out, (1, 0, 2)).reshape(T, D).astype(jnp.bfloat16)

        out = jnp.dot(head_cat, wproj, preferred_element_type=jnp.float32)  # (T, E)
        out = out + bias
        o_ref[b] = out.astype(o_ref.dtype)


# ----------------------------------------------------------------------------
# One-time parameter packing (call at parameter-prep time, NOT per forward).
# ----------------------------------------------------------------------------
def pack_mha_params(wq, wk, wv, w_proj, b_proj):
    """wq/wk/wv: (H, C, hs); w_proj: (H*hs, E); b_proj: (1, E).

    Returns (w_qkv bf16 (C, 3*H*hs) with 1/sqrt(hs) folded into the Q block,
             w_proj bf16 (H*hs, E), bias f32 (1, E)).
    """
    H, C, hs = wq.shape
    E = w_proj.shape[1]
    scale = hs ** -0.5  # 0.25 for hs=16 -> exact in bf16
    wq_p = jnp.transpose(wq * scale, (1, 0, 2)).reshape(C, H * hs)
    wk_p = jnp.transpose(wk, (1, 0, 2)).reshape(C, H * hs)
    wv_p = jnp.transpose(wv, (1, 0, 2)).reshape(C, H * hs)
    w_qkv = jnp.concatenate([wq_p, wk_p, wv_p], axis=1).astype(jnp.bfloat16)
    return w_qkv, w_proj.astype(jnp.bfloat16), b_proj.reshape(1, E).astype(jnp.float32)


def multi_head_attention(x, w_qkv, w_proj_bf, bias, *, num_heads, head_size,
                         out_dtype=jnp.float32):
    """x: (B, T, C) f32; packed weights from pack_mha_params. Returns (B, T, E)."""
    B, T, C = x.shape
    D = num_heads * head_size
    E = w_proj_bf.shape[1]
    assert w_qkv.shape == (C, 3 * D)

    bb = _rows_per_program(B)
    bf16_exp = _use_bf16_exp()

    kernel = functools.partial(_mha_fused_kernel, num_heads=num_heads,
                               head_size=head_size, bf16_exp=bf16_exp)
    return pl.pallas_call(
        kernel,
        out_shape=jax.ShapeDtypeStruct((B, T, E), out_dtype),
        grid_spec=pltpu.PrefetchScalarGridSpec(
            num_scalar_prefetch=0,
            grid=(B // bb,),
            in_specs=[
                pl.BlockSpec((bb, T, C), lambda i: (i, 0, 0)),     # x slab (f32, cast in VMEM)
                pl.BlockSpec((C, 3 * D), lambda i: (0, 0)),        # packed QKV weights (bf16)
                pl.BlockSpec((D, E), lambda i: (0, 0)),            # output projection (bf16)
                pl.BlockSpec((1, E), lambda i: (0, 0)),            # bias (f32, kept 2-D)
            ],
            out_specs=pl.BlockSpec((bb, T, E), lambda i: (i, 0, 0)),  # lane-dense output
        ),
        compiler_params=pltpu.CompilerParams(
            dimension_semantics=("parallel",),
        ),
    )(x, w_qkv, w_proj_bf, bias)


# ----------------------------------------------------------------------------
# Pure-JAX f32 reference for correctness check
# ----------------------------------------------------------------------------
def reference(x, wq, wk, wv, w_proj, b_proj):
    B, T, C = x.shape
    H, _, hs = wq.shape
    outs = []
    tril = jnp.tril(jnp.ones((T, T)))
    for h in range(H):
        q = x @ wq[h]
        k = x @ wk[h]
        v = x @ wv[h]
        wei = (q @ jnp.swapaxes(k, -2, -1)) * (hs ** -0.5)
        wei = jnp.where(tril == 0, -jnp.inf, wei)
        wei = jax.nn.softmax(wei, axis=-1)
        outs.append(wei @ v)
    cat = jnp.concatenate(outs, axis=-1)
    return cat @ w_proj + b_proj[0]


if __name__ == "__main__":
    B, T = 2, 8
    num_heads, head_size = 4, 16
    C = n_embd  # 384

    key = jax.random.PRNGKey(0)
    kx, kq, kk, kv, kw, kb = jax.random.split(key, 6)

    x = jax.random.normal(kx, (B, T, C), dtype=jnp.float32)
    # Per-head QKV weights, stacked: (H, C, head_size)  (already x @ W layout)
    wq = jax.random.normal(kq, (num_heads, C, head_size), dtype=jnp.float32) * 0.02
    wk = jax.random.normal(kk, (num_heads, C, head_size), dtype=jnp.float32) * 0.02
    wv = jax.random.normal(kv, (num_heads, C, head_size), dtype=jnp.float32) * 0.02
    # Output projection: (H*head_size, n_embd) plus bias (kept 2-D for TPU layout)
    w_proj = jax.random.normal(kw, (num_heads * head_size, C), dtype=jnp.float32) * 0.02
    b_proj = jax.random.normal(kb, (1, C), dtype=jnp.float32) * 0.02

    # Pack weights ONCE (outside the per-call path).
    w_qkv, w_proj_bf, bias = pack_mha_params(wq, wk, wv, w_proj, b_proj)

    out = multi_head_attention(x, w_qkv, w_proj_bf, bias,
                               num_heads=num_heads, head_size=head_size)
    out = jax.block_until_ready(out)

    ref = reference(x, wq, wk, wv, w_proj, b_proj)
    assert out.shape == (B, T, C), out.shape
    # bf16 MXU operands with f32 accumulation / f32 softmax stats -> loose tolerance
    err = float(jnp.max(jnp.abs(out - ref)))
    assert jnp.allclose(out, ref, atol=2e-2, rtol=2e-2), err

    print("KERNEL_OK")
</pallas_src>

<mosaic_0001>
module attributes {stable_mosaic.version = 11 : i64} {
  func.func @_mha_fused_kernel(%arg0: i32, %arg1: memref<1x8x384xf32, #tpu.memory_space<vmem>>, %arg2: memref<384x192xbf16, #tpu.memory_space<vmem>>, %arg3: memref<64x384xbf16, #tpu.memory_space<vmem>>, %arg4: memref<1x384xf32, #tpu.memory_space<vmem>>, %arg5: memref<1x8x384xf32, #tpu.memory_space<vmem>>) attributes {dimension_semantics = [#tpu.dimension_semantics<parallel>], iteration_bounds = array<i64: 2>, scalar_prefetch = 0 : i64, scratch_operands = 0 : i64, tpu.core_type = #tpu.core_type<tc>, window_params = [{transform_indices = @transform_0, window_bounds = array<i64: 1, 8, 384>}, {pipeline_mode = #tpu.pipeline_mode<synchronous>, transform_indices = @transform_1, window_bounds = array<i64: 384, 192>}, {pipeline_mode = #tpu.pipeline_mode<synchronous>, transform_indices = @transform_2, window_bounds = array<i64: 64, 384>}, {pipeline_mode = #tpu.pipeline_mode<synchronous>, transform_indices = @transform_3, window_bounds = array<i64: 1, 384>}, {transform_indices = @transform_4, window_bounds = array<i64: 1, 8, 384>}]} {
    %c0 = arith.constant 0 : index
    %c0_0 = arith.constant 0 : index
    %c0_1 = arith.constant 0 : index
    %0 = vector.load %arg1[%c0, %c0_0, %c0_1] : memref<1x8x384xf32, #tpu.memory_space<vmem>>, vector<1x8x384xf32>
    %1 = vector.shape_cast %0 : vector<1x8x384xf32> to vector<8x384xf32>
    %2 = arith.truncf %1 : vector<8x384xf32> to vector<8x384xbf16>
    %c0_2 = arith.constant 0 : index
    %c0_3 = arith.constant 0 : index
    %3 = vector.load %arg2[%c0_2, %c0_3] : memref<384x192xbf16, #tpu.memory_space<vmem>>, vector<384x192xbf16>
    %c0_4 = arith.constant 0 : index
    %c0_5 = arith.constant 0 : index
    %4 = vector.load %arg3[%c0_4, %c0_5] : memref<64x384xbf16, #tpu.memory_space<vmem>>, vector<64x384xbf16>
    %c0_6 = arith.constant 0 : index
    %c0_7 = arith.constant 0 : index
    %5 = vector.load %arg4[%c0_6, %c0_7] : memref<1x384xf32, #tpu.memory_space<vmem>>, vector<1x384xf32>
    %cst = arith.constant dense<0.000000e+00> : vector<8x192xf32>
    %6 = tpu.matmul %2, %3, %cst {dimension_numbers = #tpu.dot_dimension_numbers<[1], [0], [0], [1], [0, 0, 1, 1], [], []>} : vector<8x384xbf16>, vector<384x192xbf16>, vector<8x192xf32> -> vector<8x192xf32>
    %7 = vector.shape_cast %6 : vector<8x192xf32> to vector<1x8x192xf32>
    %8 = tpu.iota {dimensions = array<i32: 0>} : vector<8x8xi32>
    %9 = tpu.iota {dimensions = array<i32: 1>} : vector<8x8xi32>
    %10 = arith.cmpi sle, %9, %8 : vector<8x8xi32>
    %11 = vector.shape_cast %10 : vector<8x8xi1> to vector<1x8x8xi1>
    %12 = vector.shape_cast %7 : vector<1x8x192xf32> to vector<8x192xf32>
    %13 = vector.extract_strided_slice %12 {offsets = [0, 0], sizes = [8, 64], strides = [1, 1]} : vector<8x192xf32> to vector<8x64xf32>
    %14 = vector.shape_cast %13 : vector<8x64xf32> to vector<8x4x16xf32>
    %15 = tpu.transpose %14, [1, 0, 2] : vector<8x4x16xf32> -> vector<4x8x16xf32>
    %16 = arith.truncf %15 : vector<4x8x16xf32> to vector<4x8x16xbf16>
    %17 = vector.extract_strided_slice %12 {offsets = [0, 64], sizes = [8, 64], strides = [1, 1]} : vector<8x192xf32> to vector<8x64xf32>
    %18 = vector.shape_cast %17 : vector<8x64xf32> to vector<8x4x16xf32>
    %19 = tpu.transpose %18, [1, 0, 2] : vector<8x4x16xf32> -> vector<4x8x16xf32>
    %20 = arith.truncf %19 : vector<4x8x16xf32> to vector<4x8x16xbf16>
    %21 = vector.extract_strided_slice %12 {offsets = [0, 128], sizes = [8, 64], strides = [1, 1]} : vector<8x192xf32> to vector<8x64xf32>
    %22 = vector.shape_cast %21 : vector<8x64xf32> to vector<8x4x16xf32>
    %23 = tpu.transpose %22, [1, 0, 2] : vector<8x4x16xf32> -> vector<4x8x16xf32>
    %24 = arith.truncf %23 : vector<4x8x16xf32> to vector<4x8x16xbf16>
    "tpu.trace_start"() <{level = 10 : i32, message = "hqd,hkd->hqk"}> : () -> ()
    %cst_8 = arith.constant dense<0.000000e+00> : vector<4x8x8xf32>
    %25 = tpu.matmul %16, %20, %cst_8 {dimension_numbers = #tpu.dot_dimension_numbers<[2], [2], [1], [1], [0, 0, 0, 1, 1, 1], [0], [0]>} : vector<4x8x16xbf16>, vector<4x8x16xbf16>, vector<4x8x8xf32> -> vector<4x8x8xf32>
    %cst_9 = arith.constant -1.000000e+30 : f32
    "tpu.trace_stop"() : () -> ()
    %26 = vector.shape_cast %11 : vector<1x8x8xi1> to vector<1x8x8xi1>
    %27 = vector.broadcast %26 : vector<1x8x8xi1> to vector<4x8x8xi1>
    %28 = vector.broadcast %cst_9 : f32 to vector<4x8x8xf32>
    %29 = arith.select %27, %25, %28 : vector<4x8x8xi1>, vector<4x8x8xf32>
    %cst_10 = arith.constant dense<0xFF800000> : vector<4x8xf32>
    %30 = vector.multi_reduction <maximumf>, %29, %cst_10 [2] : vector<4x8x8xf32> to vector<4x8xf32>
    %31 = vector.shape_cast %30 : vector<4x8xf32> to vector<4x8x1xf32>
    %32 = vector.broadcast %31 : vector<4x8x1xf32> to vector<4x8x8xf32>
    %33 = arith.subf %29, %32 : vector<4x8x8xf32>
    %34 = math.exp %33 : vector<4x8x8xf32>
    %cst_11 = arith.constant dense<0.000000e+00> : vector<4x8xf32>
    %35 = vector.multi_reduction <add>, %34, %cst_11 [2] : vector<4x8x8xf32> to vector<4x8xf32>
    %36 = vector.shape_cast %35 : vector<4x8xf32> to vector<4x8x1xf32>
    %37 = tpu.reciprocal %36 {approx = true} : vector<4x8x1xf32> -> vector<4x8x1xf32>
    %38 = vector.broadcast %37 : vector<4x8x1xf32> to vector<4x8x8xf32>
    %39 = arith.mulf %34, %38 : vector<4x8x8xf32>
    %40 = arith.truncf %39 : vector<4x8x8xf32> to vector<4x8x8xbf16>
    "tpu.trace_start"() <{level = 10 : i32, message = "hqk,hkd->hqd"}> : () -> ()
    %cst_12 = arith.constant dense<0.000000e+00> : vector<4x8x16xf32>
    %41 = tpu.matmul %40, %24, %cst_12 {dimension_numbers = #tpu.dot_dimension_numbers<[2], [1], [1], [2], [0, 0, 0, 1, 1, 2], [0], [0]>} : vector<4x8x8xbf16>, vector<4x8x16xbf16>, vector<4x8x16xf32> -> vector<4x8x16xf32>
    "tpu.trace_stop"() : () -> ()
    %42 = tpu.transpose %41, [1, 0, 2] : vector<4x8x16xf32> -> vector<8x4x16xf32>
    %43 = vector.shape_cast %42 : vector<8x4x16xf32> to vector<8x64xf32>
    %44 = arith.truncf %43 : vector<8x64xf32> to vector<8x64xbf16>
    %cst_13 = arith.constant dense<0.000000e+00> : vector<8x384xf32>
    %45 = tpu.matmul %44, %4, %cst_13 {dimension_numbers = #tpu.dot_dimension_numbers<[1], [0], [0], [1], [0, 0, 1, 1], [], []>} : vector<8x64xbf16>, vector<64x384xbf16>, vector<8x384xf32> -> vector<8x384xf32>
    %46 = vector.broadcast %5 : vector<1x384xf32> to vector<8x384xf32>
    %47 = arith.addf %45, %46 : vector<8x384xf32>
    %c0_14 = arith.constant 0 : index
    %c0_15 = arith.constant 0 : index
    %c0_16 = arith.constant 0 : index
    %48 = vector.load %arg5[%c0_14, %c0_15, %c0_16] : memref<1x8x384xf32, #tpu.memory_space<vmem>>, vector<1x8x384xf32>
    %49 = vector.shape_cast %48 : vector<1x8x384xf32> to vector<8x384xf32>
    %50 = vector.shape_cast %47 : vector<8x384xf32> to vector<1x8x384xf32>
    tpu.vector_store %arg5[%c0_14, %c0_15, %c0_16], %50 {strides = array<i32>} : memref<1x8x384xf32, #tpu.memory_space<vmem>>, vector<1x8x384xf32>,
    return
  }
  func.func @transform_0(%arg0: i32) -> (i32, i32, i32) {
    %c0_i32 = arith.constant 0 : i32
    %c0_i32_0 = arith.constant 0 : i32
    %c0_i32_1 = arith.constant 0 : i32
    return %arg0, %c0_i32, %c0_i32_0 : i32, i32, i32
  }
  func.func @transform_1(%arg0: i32) -> (i32, i32) {
    %c0_i32 = arith.constant 0 : i32
    %c0_i32_0 = arith.constant 0 : i32
    %c0_i32_1 = arith.constant 0 : i32
    return %c0_i32, %c0_i32_0 : i32, i32
  }
  func.func @transform_2(%arg0: i32) -> (i32, i32) {
    %c0_i32 = arith.constant 0 : i32
    %c0_i32_0 = arith.constant 0 : i32
    %c0_i32_1 = arith.constant 0 : i32
    return %c0_i32, %c0_i32_0 : i32, i32
  }
  func.func @transform_3(%arg0: i32) -> (i32, i32) {
    %c0_i32 = arith.constant 0 : i32
    %c0_i32_0 = arith.constant 0 : i32
    %c0_i32_1 = arith.constant 0 : i32
    return %c0_i32, %c0_i32_0 : i32, i32
  }
  func.func @transform_4(%arg0: i32) -> (i32, i32, i32) {
    %c0_i32 = arith.constant 0 : i32
    %c0_i32_0 = arith.constant 0 : i32
    %c0_i32_1 = arith.constant 0 : i32
    return %arg0, %c0_i32, %c0_i32_0 : i32, i32, i32
  }
}

</mosaic_0001>

<llo_original>
// kernel: tpu_custom_call.1
$region0: #{tpu_custom_call.1}
  #allocation0 [shape = 'u32[]', space=smem, size = 0x4, offset = 0x4, fixed_abs, tag = 'smem constant byte address 0x4 - core index']
  #allocation1 [shape = 'u32[144,128]{1,0:T(1,128)}', space=vmem, size = 0x12000, scoped, tag = 'internal scratch']
  %s0 = inlined_call_operand.vmem [shape: f32[2,8,384], index: 0, kind: input, shape index: {}]
  %s1 = inlined_call_operand.vmem [shape: bf16[384,192], index: 1, kind: input, shape index: {}]
  %s2 = inlined_call_operand.vmem [shape: bf16[64,384], index: 2, kind: input, shape index: {}]
  %s3 = inlined_call_operand.vmem [shape: f32[1,384], index: 3, kind: input, shape index: {}]
  %s4 = inlined_call_operand.hbm [shape: f32[2,8,384], index: 4, kind: output, shape index: {}]
  %s5 = sld [smem:[#allocation0]]
  $region49: #{tpu_custom_call.1} parent=0
    _
  %s7 = ssub.s32 1, %s5
  %s8 = scalar_select 0, %s7, %s5
  $region1: #{tpu_custom_call.1} parent=0
    #allocation2 [shape = 'u8[24576]{0}', space=vmem, size = 0x6000, scoped, tag = 'output window, operand 0']
    #allocation3 [shape = 's32[2]{0}', space=sflag, size = 0x8, scoped, tag = 'scoped memory for tpu_custom_call.1']
    %9 = vsyncpa [#allocation3], 0
    %s10 = scalar_lea.sflag [#allocation3], 1
    %11 = vsyncpa %s10, 0
    loop: start=0, step=1, limit=4
    $region2: #{tpu_custom_call.1} parent=1 // loop_pre_header
      _
    $region3: #{tpu_custom_call.1} parent=1 // loop_header
      %s13 = sphi 0, %s17
      %p14 = scmp.ge.s32.totalorder %s13, 4
      %s23 = sphi 0, %s25
      %s26 = sphi 0, %s23
      %s27 = sphi 0, %s26
      %s43 = sphi 0, %s27
      %s47 = sphi 0, %s47
      %s49 = sphi 0, %s47
      %s50 = sphi 0, %s49
      %s64 = sphi 0, %s50
      %s68 = sphi 0, %s68
      %s70 = sphi 0, %s68
      %s71 = sphi 0, %s70
      %s85 = sphi 0, %s71
      %s89 = sphi 0, %s89
      %s91 = sphi 0, %s89
      %s92 = sphi 0, %s91
      %s106 = sphi 0, %s92
      %s112 = sphi 0, %s114
      %s115 = sphi 0, %s112
      %s116 = sphi 0, %s115
      %s132 = sphi 0, %s116
    $region4: #{tpu_custom_call.1} parent=1 // loop_header_branch
      %16 = sbr.rel (%p14) target = $region8
    $region5: #{tpu_custom_call.1} parent=1 // loop_body
      %s18 = ssub.s32 %s13, 1
      %s19 = ssub.s32 %s13, 2
      %s20 = sadd.s32 %s13, 1
      %s21 = ssub.s32 %s13, %s20
      %p22 = scmp.eq.s32.totalorder %s21, 0
      %s24 = sadd.s32 %s23, 1
      %s25 = scalar_select %p22, %s23, %s24
      %p28 = pneg %p22
      %p29 = scmp.eq.s32.totalorder %s13, 1
      %p30 = por %p28, %p29
      %p31 = scmp.ne.s32.totalorder %s23, %s26
      %p32 = scmp.eq.s32.totalorder %s13, 0
      %p33 = por %p31, %p32
      %p34 = scmp.ne.s32.totalorder %s23, %s26
      %p35 = scmp.eq.s32.totalorder %s18, 1
      %p36 = por %p34, %p35
      %p37 = scmp.ne.s32.totalorder %s26, %s27
      %p38 = scmp.eq.s32.totalorder %s18, 0
      %p39 = por %p37, %p38
      %p40 = scmp.ne.s32.totalorder %s26, %s27
      %p41 = scmp.eq.s32.totalorder %s19, 1
      %p42 = por %p40, %p41
      %p44 = scmp.ne.s32.totalorder %s27, %s43
      %p45 = scmp.eq.s32.totalorder %s19, 0
      %p46 = por %p44, %p45
      %s48 = sadd.s32 %s47, 1
      %p51 = scmp.eq.s32.totalorder %s13, 1
      %p52 = scmp.ne.s32.totalorder %s47, %s49
      %p53 = scmp.eq.s32.totalorder %s13, 0
      %p54 = por %p52, %p53
      %p55 = scmp.ne.s32.totalorder %s47, %s49
      %p56 = scmp.eq.s32.totalorder %s18, 1
      %p57 = por %p55, %p56
      %p58 = scmp.ne.s32.totalorder %s49, %s50
      %p59 = scmp.eq.s32.totalorder %s18, 0
      %p60 = por %p58, %p59
      %p61 = scmp.ne.s32.totalorder %s49, %s50
      %p62 = scmp.eq.s32.totalorder %s19, 1
      %p63 = por %p61, %p62
      %p65 = scmp.ne.s32.totalorder %s50, %s64
      %p66 = scmp.eq.s32.totalorder %s19, 0
      %p67 = por %p65, %p66
      %s69 = sadd.s32 %s68, 1
      %p72 = scmp.eq.s32.totalorder %s13, 1
      %p73 = scmp.ne.s32.totalorder %s68, %s70
      %p74 = scmp.eq.s32.totalorder %s13, 0
      %p75 = por %p73, %p74
      %p76 = scmp.ne.s32.totalorder %s68, %s70
      %p77 = scmp.eq.s32.totalorder %s18, 1
      %p78 = por %p76, %p77
      %p79 = scmp.ne.s32.totalorder %s70, %s71
      %p80 = scmp.eq.s32.totalorder %s18, 0
      %p81 = por %p79, %p80
      %p82 = scmp.ne.s32.totalorder %s70, %s71
      %p83 = scmp.eq.s32.totalorder %s19, 1
      %p84 = por %p82, %p83
      %p86 = scmp.ne.s32.totalorder %s71, %s85
      %p87 = scmp.eq.s32.totalorder %s19, 0
      %p88 = por %p86, %p87
      %s90 = sadd.s32 %s89, 1
      %p93 = scmp.eq.s32.totalorder %s13, 1
      %p94 = scmp.ne.s32.totalorder %s89, %s91
      %p95 = scmp.eq.s32.totalorder %s13, 0
      %p96 = por %p94, %p95
      %p97 = scmp.ne.s32.totalorder %s89, %s91
      %p98 = scmp.eq.s32.totalorder %s18, 1
      %p99 = por %p97, %p98
      %p100 = scmp.ne.s32.totalorder %s91, %s92
      %p101 = scmp.eq.s32.totalorder %s18, 0
      %p102 = por %p100, %p101
      %p103 = scmp.ne.s32.totalorder %s91, %s92
      %p104 = scmp.eq.s32.totalorder %s19, 1
      %p105 = por %p103, %p104
      %p107 = scmp.ne.s32.totalorder %s92, %s106
      %p108 = scmp.eq.s32.totalorder %s19, 0
      %p109 = por %p107, %p108
      %s110 = ssub.s32 %s13, %s20
      %p111 = scmp.eq.s32.totalorder %s110, 0
      %s113 = sadd.s32 %s112, 1
      %s114 = scalar_select %p111, %s112, %s113
      %p117 = pneg %p111
      %p118 = scmp.eq.s32.totalorder %s13, 1
      %p119 = por %p117, %p118
      %p120 = scmp.ne.s32.totalorder %s112, %s115
      %p121 = scmp.eq.s32.totalorder %s13, 0
      %p122 = por %p120, %p121
      %p123 = scmp.ne.s32.totalorder %s112, %s115
      %p124 = scmp.eq.s32.totalorder %s18, 1
      %p125 = por %p123, %p124
      %p126 = scmp.ne.s32.totalorder %s115, %s116
      %p127 = scmp.eq.s32.totalorder %s18, 0
      %p128 = por %p126, %p127
      %p129 = scmp.ne.s32.totalorder %s115, %s116
      %p130 = scmp.eq.s32.totalorder %s19, 1
      %p131 = por %p129, %p130
      %p133 = scmp.ne.s32.totalorder %s116, %s132
      %p134 = scmp.eq.s32.totalorder %s19, 0
      %p135 = por %p133, %p134
      %p136 = scmp.le.s32.totalorder 1, %s13
      %p137 = scmp.lt.s32.totalorder %s13, 3
      %p138 = pnand %p136, %p137
      %p139 = pneg %p138
      // Predicated region
      $region9: #{tpu_custom_call.1} parent=5 // pred_check
        _
      $region10: #{tpu_custom_call.1} parent=5 // pred_check_branch
        %141 = sbr.rel (%p138) target = $region12
      $region11: #{tpu_custom_call.1} parent=5 // pred_region
        %s142 = ssub.s32 %s13, 1
        // Predicated region
        $region13: #{tpu_custom_call.1} parent=11 // pred_check
          %p143 = pneg %p60
        $region14: #{tpu_custom_call.1} parent=11 // pred_check_branch
          %145 = sbr.rel (%p143) target = $region16
        $region15: #{tpu_custom_call.1} parent=11 // pred_region
          _
        $region16: #{tpu_custom_call.1} parent=11 // pred_fallthru
          _
        // Predicated region
        $region17: #{tpu_custom_call.1} parent=11 // pred_check
          %p146 = pneg %p81
        $region18: #{tpu_custom_call.1} parent=11 // pred_check_branch
          %148 = sbr.rel (%p146) target = $region20
        $region19: #{tpu_custom_call.1} parent=11 // pred_region
          _
        $region20: #{tpu_custom_call.1} parent=11 // pred_fallthru
          _
        // Predicated region
        $region21: #{tpu_custom_call.1} parent=11 // pred_check
          %p149 = pneg %p102
        $region22: #{tpu_custom_call.1} parent=11 // pred_check_branch
          %151 = sbr.rel (%p149) target = $region24
        $region23: #{tpu_custom_call.1} parent=11 // pred_region
          _
        $region24: #{tpu_custom_call.1} parent=11 // pred_fallthru
          _
      $region12: #{tpu_custom_call.1} parent=5 // pred_fallthru
        _
      %p152 = scmp.lt.s32.totalorder %s13, 2
      // Predicated region
      $region25: #{tpu_custom_call.1} parent=5 // pred_check
        %p153 = pneg %p152
      $region26: #{tpu_custom_call.1} parent=5 // pred_check_branch
        %155 = sbr.rel (%p153) target = $region28
      $region27: #{tpu_custom_call.1} parent=5 // pred_region
        // Predicated region
        $region29: #{tpu_custom_call.1} parent=27 // pred_check
          %p156 = pneg %p33
        $region30: #{tpu_custom_call.1} parent=27 // pred_check_branch
          %158 = sbr.rel (%p156) target = $region32
        $region31: #{tpu_custom_call.1} parent=27 // pred_region
          %p159 = scmp.lt.s32.totalorder %s13, 1
          %s160 = scalar_select %p159, %s13, 1
          %s161 = smul.addr %s160, 3
          %s162 = smul.addr %s161, 8
          %s163 = scalar_lea.vmem %s0, %s162
        $region32: #{tpu_custom_call.1} parent=27 // pred_fallthru
          _
      $region28: #{tpu_custom_call.1} parent=5 // pred_fallthru
        _
      %p164 = scmp.le.s32.totalorder 1, %s13
      %p165 = scmp.lt.s32.totalorder %s13, 3
      %p166 = pnand %p164, %p165
      %p167 = pneg %p166
      // Predicated region
      $region33: #{tpu_custom_call.1} parent=5 // pred_check
        _
      $region34: #{tpu_custom_call.1} parent=5 // pred_check_branch
        %169 = sbr.rel (%p166) target = $region36
      $region35: #{tpu_custom_call.1} parent=5 // pred_region
        %s170 = ssub.s32 %s13, 1
        %p171 = scmp.lt.s32.totalorder %s18, 1
        %s172 = scalar_select %p171, %s18, 1
        %s173 = smul.addr %s172, 3
        %s174 = smul.addr %s173, 8
        %s175 = scalar_lea.vmem %s0, %s174
        %p176 = pneg %p39
        %p177 = pneg %p36
        %p178 = pneg %p60
        %p179 = pneg %p57
        %p180 = pneg %p81
        %p181 = pneg %p78
        %p182 = pneg %p102
        %p183 = pneg %p99
        %p184 = pneg %p128
        %p185 = pneg %p125
        %s186 = sand.u32 %s115, 1
        %s187 = scalar_lea.sflag [#allocation3], %s186
        %s188 = sand.u32 %s115, 1
        %s189 = smul.addr %s188, 24
        %s190 = scalar_lea.vmem [#allocation2], %s189
        %p191 = scmp.lt.s32.totalorder %s18, 1
        %s192 = scalar_select %p191, %s18, 1
        %s193 = smul.addr %s192, 3
        %s194 = smul.addr %s193, 8
        %s195 = scalar_lea.vmem %s0, %s194
        %v197 = vld [vmem:[%s195] sm:$0xff]
        %v198 = vld [vmem:[%s195 + $0x8] sm:$0xff]
        %v199 = vld [vmem:[%s195 + $0x10] sm:$0xff]
        %v200 = vpack.c.bf16 %v197, %v197
        %v201 = vpack.c.bf16 %v198, %v198
        %v202 = vpack.c.bf16 %v199, %v199
        %v203 = vld [vmem:[%s1] sm:$0xff]
        %v204 = vld [vmem:[%s1 + $0x8] sm:$0xff]
        %v205 = vld [vmem:[%s1 + $0x10] sm:$0xff]
        %v206 = vld [vmem:[%s1 + $0x18] sm:$0xff]
        %v207 = vld [vmem:[%s1 + $0x20] sm:$0xff]
        %v208 = vld [vmem:[%s1 + $0x28] sm:$0xff]
        %v209 = vld [vmem:[%s1 + $0x30] sm:$0xff]
        %v210 = vld [vmem:[%s1 + $0x38] sm:$0xff]
        %v211 = vld [vmem:[%s1 + $0x40] sm:$0xff]
        %v212 = vld [vmem:[%s1 + $0x48] sm:$0xff]
        %v213 = vld [vmem:[%s1 + $0x50] sm:$0xff]
        %v214 = vld [vmem:[%s1 + $0x58] sm:$0xff]
        %v215 = vld [vmem:[%s1 + $0x60] sm:$0xff]
        %v216 = vld [vmem:[%s1 + $0x68] sm:$0xff]
        %v217 = vld [vmem:[%s1 + $0x70] sm:$0xff]
        %v218 = vld [vmem:[%s1 + $0x78] sm:$0xff]
        %v219 = vld [vmem:[%s1 + $0x80] sm:$0xff]
        %v220 = vld [vmem:[%s1 + $0x88] sm:$0xff]
        %v221 = vld [vmem:[%s1 + $0x90] sm:$0xff]
        %v222 = vld [vmem:[%s1 + $0x98] sm:$0xff]
        %v223 = vld [vmem:[%s1 + $0xa0] sm:$0xff]
        %v224 = vld [vmem:[%s1 + $0xa8] sm:$0xff]
        %v225 = vld [vmem:[%s1 + $0xb0] sm:$0xff]
        %v226 = vld [vmem:[%s1 + $0xb8] sm:$0xff]
        %v227 = vld [vmem:[%s1 + $0xc0] sm:$0xff]
        %v228 = vld [vmem:[%s1 + $0xc8] sm:$0xff]
        %v229 = vld [vmem:[%s1 + $0xd0] sm:$0xff]
        %v230 = vld [vmem:[%s1 + $0xd8] sm:$0xff]
        %v231 = vld [vmem:[%s1 + $0xe0] sm:$0xff]
        %v232 = vld [vmem:[%s1 + $0xe8] sm:$0xff]
        %v233 = vld [vmem:[%s1 + $0xf0] sm:$0xff]
        %v234 = vld [vmem:[%s1 + $0xf8] sm:$0xff]
        %v235 = vld [vmem:[%s1 + $0x100] sm:$0xff]
        %v236 = vld [vmem:[%s1 + $0x108] sm:$0xff]
        %v237 = vld [vmem:[%s1 + $0x110] sm:$0xff]
        %v238 = vld [vmem:[%s1 + $0x118] sm:$0xff]
        %v239 = vld [vmem:[%s1 + $0x120] sm:$0xff]
        %v240 = vld [vmem:[%s1 + $0x128] sm:$0xff]
        %v241 = vld [vmem:[%s1 + $0x130] sm:$0xff]
        %v242 = vld [vmem:[%s1 + $0x138] sm:$0xff]
        %v243 = vld [vmem:[%s1 + $0x140] sm:$0xff]
        %v244 = vld [vmem:[%s1 + $0x148] sm:$0xff]
        %v245 = vld [vmem:[%s1 + $0x150] sm:$0xff]
        %v246 = vld [vmem:[%s1 + $0x158] sm:$0xff]
        %v247 = vld [vmem:[%s1 + $0x160] sm:$0xff]
        %v248 = vld [vmem:[%s1 + $0x168] sm:$0xff]
        %v249 = vld [vmem:[%s1 + $0x170] sm:$0xff]
        %v250 = vld [vmem:[%s1 + $0x178] sm:$0xff]
        %v251 = vld [vmem:[%s2] sm:$0xff]
        %v252 = vld [vmem:[%s2 + $0x8] sm:$0xf]
        %v253 = vld [vmem:[%s2 + $0xc] sm:$0xff]
        %v254 = vld [vmem:[%s2 + $0x14] sm:$0xf]
        %v255 = vld [vmem:[%s2 + $0x18] sm:$0xff]
        %v256 = vld [vmem:[%s2 + $0x20] sm:$0xf]
        %v257 = vld [vmem:[%s2 + $0x24] sm:$0xff]
        %v258 = vld [vmem:[%s2 + $0x2c] sm:$0xf]
        %v259 = vld [vmem:[%s2 + $0x30] sm:$0xff]
        %v260 = vld [vmem:[%s2 + $0x38] sm:$0xf]
        %v261 = vld [vmem:[%s2 + $0x3c] sm:$0xff]
        %v262 = vld [vmem:[%s2 + $0x44] sm:$0xf]
        %v263 = vld [vmem:[%s2 + $0x48] sm:$0xff]
        %v264 = vld [vmem:[%s2 + $0x50] sm:$0xf]
        %v265 = vld [vmem:[%s2 + $0x54] sm:$0xff]
        %v266 = vld [vmem:[%s2 + $0x5c] sm:$0xf]
        %v267 = vld [vmem:[%s3] sm:$0x7]
        %v316 = vunpack.c.l.b16 %v203
        %v317 = vunpack.c.h.b16 %v203
        %v318 = vunpack.c.l.b16 %v204
        %v319 = vunpack.c.h.b16 %v204
        %v320 = vunpack.c.l.b16 %v205
        %v321 = vunpack.c.h.b16 %v205
        %v322 = vunpack.c.l.b16 %v206
        %v323 = vunpack.c.h.b16 %v206
        %v324 = vunpack.c.l.b16 %v207
        %v325 = vunpack.c.h.b16 %v207
        %v326 = vunpack.c.l.b16 %v208
        %v327 = vunpack.c.h.b16 %v208
        %v328 = vunpack.c.l.b16 %v209
        %v329 = vunpack.c.h.b16 %v209
        %v330 = vunpack.c.l.b16 %v210
        %v331 = vunpack.c.h.b16 %v210
        %v332 = vunpack.c.l.b16 %v211
        %v333 = vunpack.c.h.b16 %v211
        %v334 = vunpack.c.l.b16 %v212
        %v335 = vunpack.c.h.b16 %v212
        %v336 = vunpack.c.l.b16 %v213
        %v337 = vunpack.c.h.b16 %v213
        %v338 = vunpack.c.l.b16 %v214
        %v339 = vunpack.c.h.b16 %v214
        %v340 = vunpack.c.l.b16 %v215
        %v341 = vunpack.c.h.b16 %v215
        %v342 = vunpack.c.l.b16 %v216
        %v343 = vunpack.c.h.b16 %v216
        %v344 = vunpack.c.l.b16 %v217
        %v345 = vunpack.c.h.b16 %v217
        %v346 = vunpack.c.l.b16 %v218
        %v347 = vunpack.c.h.b16 %v218
        %v348 = vunpack.c.l.b16 %v219
        %v349 = vunpack.c.h.b16 %v219
        %v350 = vunpack.c.l.b16 %v220
        %v351 = vunpack.c.h.b16 %v220
        %v352 = vunpack.c.l.b16 %v221
        %v353 = vunpack.c.h.b16 %v221
        %v354 = vunpack.c.l.b16 %v222
        %v355 = vunpack.c.h.b16 %v222
        %v356 = vunpack.c.l.b16 %v223
        %v357 = vunpack.c.h.b16 %v223
        %v358 = vunpack.c.l.b16 %v224
        %v359 = vunpack.c.h.b16 %v224
        %v360 = vunpack.c.l.b16 %v225
        %v361 = vunpack.c.h.b16 %v225
        %v362 = vunpack.c.l.b16 %v226
        %v363 = vunpack.c.h.b16 %v226
        %v364 = vunpack.c.l.b16 %v227
        %v365 = vunpack.c.h.b16 %v227
        %v366 = vunpack.c.l.b16 %v228
        %v367 = vunpack.c.h.b16 %v228
        %v368 = vunpack.c.l.b16 %v229
        %v369 = vunpack.c.h.b16 %v229
        %v370 = vunpack.c.l.b16 %v230
        %v371 = vunpack.c.h.b16 %v230
        %v372 = vunpack.c.l.b16 %v231
        %v373 = vunpack.c.h.b16 %v231
        %v374 = vunpack.c.l.b16 %v232
        %v375 = vunpack.c.h.b16 %v232
        %v376 = vunpack.c.l.b16 %v233
        %v377 = vunpack.c.h.b16 %v233
        %v378 = vunpack.c.l.b16 %v234
        %v379 = vunpack.c.h.b16 %v234
        %v380 = vunpack.c.l.b16 %v235
        %v381 = vunpack.c.h.b16 %v235
        %v382 = vunpack.c.l.b16 %v236
        %v383 = vunpack.c.h.b16 %v236
        %v384 = vunpack.c.l.b16 %v237
        %v385 = vunpack.c.h.b16 %v237
        %v386 = vunpack.c.l.b16 %v238
        %v387 = vunpack.c.h.b16 %v238
        %v388 = vunpack.c.l.b16 %v239
        %v389 = vunpack.c.h.b16 %v239
        %v390 = vunpack.c.l.b16 %v240
        %v391 = vunpack.c.h.b16 %v240
        %v392 = vunpack.c.l.b16 %v241
        %v393 = vunpack.c.h.b16 %v241
        %v394 = vunpack.c.l.b16 %v242
        %v395 = vunpack.c.h.b16 %v242
        %v396 = vunpack.c.l.b16 %v243
        %v397 = vunpack.c.h.b16 %v243
        %v398 = vunpack.c.l.b16 %v244
        %v399 = vunpack.c.h.b16 %v244
        %v400 = vunpack.c.l.b16 %v245
        %v401 = vunpack.c.h.b16 %v245
        %v402 = vunpack.c.l.b16 %v246
        %v403 = vunpack.c.h.b16 %v246
        %v404 = vunpack.c.l.b16 %v247
        %v405 = vunpack.c.h.b16 %v247
        %v406 = vunpack.c.l.b16 %v248
        %v407 = vunpack.c.h.b16 %v248
        %v408 = vunpack.c.l.b16 %v249
        %v409 = vunpack.c.h.b16 %v249
        %v410 = vunpack.c.l.b16 %v250
        %v411 = vunpack.c.h.b16 %v250
        %v412 = vpack.c.b16 %v318, %v316
        %v413 = vpack.c.b16 %v319, %v317
        %v414 = vpack.c.b16 %v322, %v320
        %v415 = vpack.c.b16 %v323, %v321
        %v416 = vpack.c.b16 %v326, %v324
        %v417 = vpack.c.b16 %v327, %v325
        %v418 = vpack.c.b16 %v330, %v328
        %v419 = vpack.c.b16 %v331, %v329
        %v420 = vpack.c.b16 %v334, %v332
        %v421 = vpack.c.b16 %v335, %v333
        %v422 = vpack.c.b16 %v338, %v336
        %v423 = vpack.c.b16 %v339, %v337
        %v424 = vpack.c.b16 %v342, %v340
        %v425 = vpack.c.b16 %v343, %v341
        %v426 = vpack.c.b16 %v346, %v344
        %v427 = vpack.c.b16 %v347, %v345
        %v428 = vpack.c.b16 %v350, %v348
        %v429 = vpack.c.b16 %v351, %v349
        %v430 = vpack.c.b16 %v354, %v352
        %v431 = vpack.c.b16 %v355, %v353
        %v432 = vpack.c.b16 %v358, %v356
        %v433 = vpack.c.b16 %v359, %v357
        %v434 = vpack.c.b16 %v362, %v360
        %v435 = vpack.c.b16 %v363, %v361
        %v436 = vpack.c.b16 %v366, %v364
        %v437 = vpack.c.b16 %v367, %v365
        %v438 = vpack.c.b16 %v370, %v368
        %v439 = vpack.c.b16 %v371, %v369
        %v440 = vpack.c.b16 %v374, %v372
        %v441 = vpack.c.b16 %v375, %v373
        %v442 = vpack.c.b16 %v378, %v376
        %v443 = vpack.c.b16 %v379, %v377
        %v444 = vpack.c.b16 %v382, %v380
        %v445 = vpack.c.b16 %v383, %v381
        %v446 = vpack.c.b16 %v386, %v384
        %v447 = vpack.c.b16 %v387, %v385
        %v448 = vpack.c.b16 %v390, %v388
        %v449 = vpack.c.b16 %v391, %v389
        %v450 = vpack.c.b16 %v394, %v392
        %v451 = vpack.c.b16 %v395, %v393
        %v452 = vpack.c.b16 %v398, %v396
        %v453 = vpack.c.b16 %v399, %v397
        %v454 = vpack.c.b16 %v402, %v400
        %v455 = vpack.c.b16 %v403, %v401
        %v456 = vpack.c.b16 %v406, %v404
        %v457 = vpack.c.b16 %v407, %v405
        %v458 = vpack.c.b16 %v410, %v408
        %v459 = vpack.c.b16 %v411, %v409
        %508 = vmatprep.subr.bf16.mxu0 %v413
        %509 = vmatpush1.bf16.msra.mxu0 %v412
        %510 = vmatprep.subr.bf16.mxu0 %v415
        %511 = vmatpush1.bf16.msra.mxu0 %v414
        %512 = vmatprep.subr.bf16.mxu0 %v417
        %513 = vmatpush1.bf16.msra.mxu0 %v416
        %514 = vmatprep.subr.bf16.mxu0 %v419
        %515 = vmatpush1.bf16.msra.mxu0 %v418
        %516 = vmatprep.subr.bf16.mxu0 %v421
        %517 = vmatpush1.bf16.msra.mxu0 %v420
        %518 = vmatprep.subr.bf16.mxu0 %v423
        %519 = vmatpush1.bf16.msra.mxu0 %v422
        %520 = vmatprep.subr.bf16.mxu0 %v425
        %521 = vmatpush1.bf16.msra.mxu0 %v424
        %522 = vmatprep.subr.bf16.mxu0 %v427
        %523 = vmatpush1.bf16.msra.mxu0 %v426
        %524 = vmatprep.subr.bf16.mxu0 %v429
        %525 = vmatpush1.bf16.msra.mxu0 %v428
        %526 = vmatprep.subr.bf16.mxu0 %v431
        %527 = vmatpush1.bf16.msra.mxu0 %v430
        %528 = vmatprep.subr.bf16.mxu0 %v433
        %529 = vmatpush1.bf16.msra.mxu0 %v432
        %530 = vmatprep.subr.bf16.mxu0 %v435
        %531 = vmatpush1.bf16.msra.mxu0 %v434
        %532 = vmatprep.subr.bf16.mxu0 %v437
        %533 = vmatpush1.bf16.msra.mxu0 %v436
        %534 = vmatprep.subr.bf16.mxu0 %v439
        %535 = vmatpush1.bf16.msra.mxu0 %v438
        %536 = vmatprep.subr.bf16.mxu0 %v441
        %537 = vmatpush1.bf16.msra.mxu0 %v440
        %538 = vmatprep.subr.bf16.mxu0 %v443
        %539 = vmatpush1.bf16.msra.mxu0 %v442
        %540 = vmatprep.mubr.bf16.mxu0 %v201
        %541 = vmatmul.mubr.bf16.gmra.mrb[0].mxu0 %v200
        %v542 = vpop.f32.mrb[0].mxu0
        %v543 = vadd.f32 0.0, %v542
        %v544 = vpop.f32.mrb[0].mxu0
        %v545 = vadd.f32 0.0, %v544
        %v546 = vpop.f32.mrb[0].mxu0
        %v547 = vpop.f32.mrb[0].mxu0
        %548 = vdwg.mxu0
        %549 = vmatprep.subr.bf16.mxu0 %v445
        %550 = vmatpush1.bf16.msra.mxu0 %v444
        %551 = vmatprep.subr.bf16.mxu0 %v447
        %552 = vmatpush1.bf16.msra.mxu0 %v446
        %553 = vmatprep.subr.bf16.mxu0 %v449
        %554 = vmatpush1.bf16.msra.mxu0 %v448
        %555 = vmatprep.subr.bf16.mxu0 %v451
        %556 = vmatpush1.bf16.msra.mxu0 %v450
        %557 = vmatprep.subr.bf16.mxu0 %v453
        %558 = vmatpush1.bf16.msra.mxu0 %v452
        %559 = vmatprep.subr.bf16.mxu0 %v455
        %560 = vmatpush1.bf16.msra.mxu0 %v454
        %561 = vmatprep.subr.bf16.mxu0 %v457
        %562 = vmatpush1.bf16.msra.mxu0 %v456
        %563 = vmatprep.subr.bf16.mxu0 %v459
        %564 = vmatpush1.bf16.msra.mxu0 %v458
        %565 = vmatprep.subr.bf16.mxu0 0
        %566 = vmatpush1.bf16.msra.mxu0 0
        %567 = vmatprep.subr.bf16.mxu0 0
        %568 = vmatpush1.bf16.msra.mxu0 0
        %569 = vmatprep.subr.bf16.mxu0 0
        %570 = vmatpush1.bf16.msra.mxu0 0
        %571 = vmatprep.subr.bf16.mxu0 0
        %572 = vmatpush1.bf16.msra.mxu0 0
        %573 = vmatprep.subr.bf16.mxu0 0
        %574 = vmatpush1.bf16.msra.mxu0 0
        %575 = vmatprep.subr.bf16.mxu0 0
        %576 = vmatpush1.bf16.msra.mxu0 0
        %577 = vmatprep.subr.bf16.mxu0 0
        %578 = vmatpush1.bf16.msra.mxu0 0
        %579 = vmatprep.subr.bf16.mxu0 0
        %580 = vmatpush1.bf16.msra.mxu0 0
        %581 = vmatprep.mubr.bf16.mxu0 0
        %582 = vmatmul.mubr.bf16.gmra.mrb[0].mxu0 %v202
        %v583 = vpop.f32.mrb[0].mxu0
        %v584 = vadd.f32 %v543, %v583
        %v585 = vpop.f32.mrb[0].mxu0
        %v586 = vadd.f32 %v545, %v585
        %v587 = vpop.f32.mrb[0].mxu0
        %v588 = vpop.f32.mrb[0].mxu0
        %589 = vdwg.mxu0
        %v590 = vlaneseq
        %v591 = vshrl.u32 %v590, 7
        %v592 = vlaneseq
        %v593 = vand.u32 %v592, 127
        %vm594 = vcmp.le.s32.totalorder %v593, %v591
        %596 = vrot.lane.b32.xlu0 %v584, 112
        %v597 = vpop.permute.xlu0 %596
        %599 = vrot.lane.b32.xlu0 %v584, 96
        %v600 = vpop.permute.xlu0 %599
        %602 = vrot.lane.b32.xlu0 %v584, 80
        %v603 = vpop.permute.xlu0 %602
        %v605 = vcombine.low %v584, %v600
        %v606 = vcombine.high %v584, %v600
        %v608 = vunpack.c.l.s4 1983009808
        %v609 = vunpack.c.0.s8 %v608
        %v610 = vlaneseq
        %v611 = vshrl.u32 %v610, 7
        %v612 = vsub.s32 %v609, %v611
        %v613 = vrot.slane %v605, %v612
        %v615 = vunpack.c.l.s4 1983009808
        %v616 = vunpack.c.0.s8 %v615
        %v617 = vlaneseq
        %v618 = vshrl.u32 %v617, 7
        %v619 = vsub.s32 %v616, %v618
        %v620 = vrot.slane %v606, %v619
        %v621 = vcombine.low %v597, %v603
        %v622 = vcombine.high %v597, %v603
        %v624 = vunpack.c.l.s4 1983009808
        %v625 = vunpack.c.0.s8 %v624
        %v626 = vlaneseq
        %v627 = vshrl.u32 %v626, 7
        %v628 = vsub.s32 %v625, %v627
        %v629 = vrot.slane %v621, %v628
        %v631 = vunpack.c.l.s4 1983009808
        %v632 = vunpack.c.0.s8 %v631
        %v633 = vlaneseq
        %v634 = vshrl.u32 %v633, 7
        %v635 = vsub.s32 %v632, %v634
        %v636 = vrot.slane %v622, %v635
        %v637 = vcombine.low %v613, %v629
        %v638 = vcombine.high %v613, %v629
        %v640 = vunpack.c.l.s4 1934713408
        %v641 = vunpack.c.0.s8 %v640
        %v642 = vlaneseq
        %v643 = vshrl.u32 %v642, 7
        %v644 = vsub.s32 %v641, %v643
        %v645 = vrot.slane %v637, %v644
        %v647 = vunpack.c.l.s4 1934713408
        %v648 = vunpack.c.0.s8 %v647
        %v649 = vlaneseq
        %v650 = vshrl.u32 %v649, 7
        %v651 = vsub.s32 %v648, %v650
        %v652 = vrot.slane %v638, %v651
        %v653 = vcombine.low %v620, %v636
        %v654 = vcombine.high %v620, %v636
        %v656 = vunpack.c.l.s4 1934713408
        %v657 = vunpack.c.0.s8 %v656
        %v658 = vlaneseq
        %v659 = vshrl.u32 %v658, 7
        %v660 = vsub.s32 %v657, %v659
        %v661 = vrot.slane %v653, %v660
        %v663 = vunpack.c.l.s4 1934713408
        %v664 = vunpack.c.0.s8 %v663
        %v665 = vlaneseq
        %v666 = vshrl.u32 %v665, 7
        %v667 = vsub.s32 %v664, %v666
        %v668 = vrot.slane %v654, %v667
        %v669 = vcombine.high %v645, 0.0
        %v670 = vcombine.high %v652, 0.0
        %v671 = vcombine.high %v661, 0.0
        %v672 = vcombine.high %v668, 0.0
        %v673 = vcombine.low %v645, %v652
        %v675 = vunpack.c.l.s4 1983009808
        %v676 = vunpack.c.0.s8 %v675
        %v677 = vlaneseq
        %v678 = vshrl.u32 %v677, 7
        %v679 = vsub.s32 %v676, %v678
        %v680 = vrot.slane %v673, %v679
        %v681 = vcombine.low %v669, %v670
        %v683 = vunpack.c.l.s4 1983009808
        %v684 = vunpack.c.0.s8 %v683
        %v685 = vlaneseq
        %v686 = vshrl.u32 %v685, 7
        %v687 = vsub.s32 %v684, %v686
        %v688 = vrot.slane %v681, %v687
        %v689 = vcombine.low %v661, %v668
        %v691 = vunpack.c.l.s4 1983009808
        %v692 = vunpack.c.0.s8 %v691
        %v693 = vlaneseq
        %v694 = vshrl.u32 %v693, 7
        %v695 = vsub.s32 %v692, %v694
        %v696 = vrot.slane %v689, %v695
        %v697 = vcombine.low %v671, %v672
        %v699 = vunpack.c.l.s4 1983009808
        %v700 = vunpack.c.0.s8 %v699
        %v701 = vlaneseq
        %v702 = vshrl.u32 %v701, 7
        %v703 = vsub.s32 %v700, %v702
        %v704 = vrot.slane %v697, %v703
        %v705 = vcombine.low %v680, %v688
        %v706 = vcombine.high %v680, %v688
        %v708 = vunpack.c.l.s4 1934713408
        %v709 = vunpack.c.0.s8 %v708
        %v710 = vlaneseq
        %v711 = vshrl.u32 %v710, 7
        %v712 = vsub.s32 %v709, %v711
        %v713 = vrot.slane %v705, %v712
        %v715 = vunpack.c.l.s4 1934713408
        %v716 = vunpack.c.0.s8 %v715
        %v717 = vlaneseq
        %v718 = vshrl.u32 %v717, 7
        %v719 = vsub.s32 %v716, %v718
        %v720 = vrot.slane %v706, %v719
        %v721 = vcombine.low %v696, %v704
        %v722 = vcombine.high %v696, %v704
        %v724 = vunpack.c.l.s4 1934713408
        %v725 = vunpack.c.0.s8 %v724
        %v726 = vlaneseq
        %v727 = vshrl.u32 %v726, 7
        %v728 = vsub.s32 %v725, %v727
        %v729 = vrot.slane %v721, %v728
        %v731 = vunpack.c.l.s4 1934713408
        %v732 = vunpack.c.0.s8 %v731
        %v733 = vlaneseq
        %v734 = vshrl.u32 %v733, 7
        %v735 = vsub.s32 %v732, %v734
        %v736 = vrot.slane %v722, %v735
        %v737 = vcombine.low %v713, %v729
        %v738 = vcombine.high %v713, %v729
        %v739 = vcombine.low %v720, %v736
        %v740 = vcombine.high %v720, %v736
        %v741 = vpack.c.bf16 %v737, %v737
        %v742 = vpack.c.bf16 %v738, %v738
        %v743 = vpack.c.bf16 %v739, %v739
        %v744 = vpack.c.bf16 %v740, %v740
        %745 = vrot.lane.b32.xlu0 %v584, 64
        %v746 = vpop.permute.xlu0 %745
        %747 = vrot.lane.b32.xlu0 %v597, 64
        %v748 = vpop.permute.xlu0 %747
        %749 = vrot.lane.b32.xlu0 %v600, 64
        %v750 = vpop.permute.xlu0 %749
        %751 = vrot.lane.b32.xlu0 %v603, 64
        %v752 = vpop.permute.xlu0 %751
        %v757 = vcombine.low %v746, %v750
        %v758 = vcombine.high %v746, %v750
        %v760 = vunpack.c.l.s4 1983009808
        %v761 = vunpack.c.0.s8 %v760
        %v762 = vlaneseq
        %v763 = vshrl.u32 %v762, 7
        %v764 = vsub.s32 %v761, %v763
        %v765 = vrot.slane %v757, %v764
        %v767 = vunpack.c.l.s4 1983009808
        %v768 = vunpack.c.0.s8 %v767
        %v769 = vlaneseq
        %v770 = vshrl.u32 %v769, 7
        %v771 = vsub.s32 %v768, %v770
        %v772 = vrot.slane %v758, %v771
        %v773 = vcombine.low %v748, %v752
        %v774 = vcombine.high %v748, %v752
        %v776 = vunpack.c.l.s4 1983009808
        %v777 = vunpack.c.0.s8 %v776
        %v778 = vlaneseq
        %v779 = vshrl.u32 %v778, 7
        %v780 = vsub.s32 %v777, %v779
        %v781 = vrot.slane %v773, %v780
        %v783 = vunpack.c.l.s4 1983009808
        %v784 = vunpack.c.0.s8 %v783
        %v785 = vlaneseq
        %v786 = vshrl.u32 %v785, 7
        %v787 = vsub.s32 %v784, %v786
        %v788 = vrot.slane %v774, %v787
        %v789 = vcombine.low %v765, %v781
        %v790 = vcombine.high %v765, %v781
        %v792 = vunpack.c.l.s4 1934713408
        %v793 = vunpack.c.0.s8 %v792
        %v794 = vlaneseq
        %v795 = vshrl.u32 %v794, 7
        %v796 = vsub.s32 %v793, %v795
        %v797 = vrot.slane %v789, %v796
        %v799 = vunpack.c.l.s4 1934713408
        %v800 = vunpack.c.0.s8 %v799
        %v801 = vlaneseq
        %v802 = vshrl.u32 %v801, 7
        %v803 = vsub.s32 %v800, %v802
        %v804 = vrot.slane %v790, %v803
        %v805 = vcombine.low %v772, %v788
        %v806 = vcombine.high %v772, %v788
        %v808 = vunpack.c.l.s4 1934713408
        %v809 = vunpack.c.0.s8 %v808
        %v810 = vlaneseq
        %v811 = vshrl.u32 %v810, 7
        %v812 = vsub.s32 %v809, %v811
        %v813 = vrot.slane %v805, %v812
        %v815 = vunpack.c.l.s4 1934713408
        %v816 = vunpack.c.0.s8 %v815
        %v817 = vlaneseq
        %v818 = vshrl.u32 %v817, 7
        %v819 = vsub.s32 %v816, %v818
        %v820 = vrot.slane %v806, %v819
        %v821 = vcombine.high %v797, 0.0
        %v822 = vcombine.high %v804, 0.0
        %v823 = vcombine.high %v813, 0.0
        %v824 = vcombine.high %v820, 0.0
        %v825 = vcombine.low %v797, %v804
        %v827 = vunpack.c.l.s4 1983009808
        %v828 = vunpack.c.0.s8 %v827
        %v829 = vlaneseq
        %v830 = vshrl.u32 %v829, 7
        %v831 = vsub.s32 %v828, %v830
        %v832 = vrot.slane %v825, %v831
        %v833 = vcombine.low %v821, %v822
        %v835 = vunpack.c.l.s4 1983009808
        %v836 = vunpack.c.0.s8 %v835
        %v837 = vlaneseq
        %v838 = vshrl.u32 %v837, 7
        %v839 = vsub.s32 %v836, %v838
        %v840 = vrot.slane %v833, %v839
        %v841 = vcombine.low %v813, %v820
        %v843 = vunpack.c.l.s4 1983009808
        %v844 = vunpack.c.0.s8 %v843
        %v845 = vlaneseq
        %v846 = vshrl.u32 %v845, 7
        %v847 = vsub.s32 %v844, %v846
        %v848 = vrot.slane %v841, %v847
        %v849 = vcombine.low %v823, %v824
        %v851 = vunpack.c.l.s4 1983009808
        %v852 = vunpack.c.0.s8 %v851
        %v853 = vlaneseq
        %v854 = vshrl.u32 %v853, 7
        %v855 = vsub.s32 %v852, %v854
        %v856 = vrot.slane %v849, %v855
        %v857 = vcombine.low %v832, %v840
        %v858 = vcombine.high %v832, %v840
        %v860 = vunpack.c.l.s4 1934713408
        %v861 = vunpack.c.0.s8 %v860
        %v862 = vlaneseq
        %v863 = vshrl.u32 %v862, 7
        %v864 = vsub.s32 %v861, %v863
        %v865 = vrot.slane %v857, %v864
        %v867 = vunpack.c.l.s4 1934713408
        %v868 = vunpack.c.0.s8 %v867
        %v869 = vlaneseq
        %v870 = vshrl.u32 %v869, 7
        %v871 = vsub.s32 %v868, %v870
        %v872 = vrot.slane %v858, %v871
        %v873 = vcombine.low %v848, %v856
        %v874 = vcombine.high %v848, %v856
        %v876 = vunpack.c.l.s4 1934713408
        %v877 = vunpack.c.0.s8 %v876
        %v878 = vlaneseq
        %v879 = vshrl.u32 %v878, 7
        %v880 = vsub.s32 %v877, %v879
        %v881 = vrot.slane %v873, %v880
        %v883 = vunpack.c.l.s4 1934713408
        %v884 = vunpack.c.0.s8 %v883
        %v885 = vlaneseq
        %v886 = vshrl.u32 %v885, 7
        %v887 = vsub.s32 %v884, %v886
        %v888 = vrot.slane %v874, %v887
        %v889 = vcombine.low %v865, %v881
        %v890 = vcombine.high %v865, %v881
        %v891 = vcombine.low %v872, %v888
        %v892 = vcombine.high %v872, %v888
        %v893 = vpack.c.bf16 %v889, %v889
        %v894 = vpack.c.bf16 %v890, %v890
        %v895 = vpack.c.bf16 %v891, %v891
        %v896 = vpack.c.bf16 %v892, %v892
        %898 = vrot.lane.b32.xlu0 %v586, 112
        %v899 = vpop.permute.xlu0 %898
        %901 = vrot.lane.b32.xlu0 %v586, 96
        %v902 = vpop.permute.xlu0 %901
        %904 = vrot.lane.b32.xlu0 %v586, 80
        %v905 = vpop.permute.xlu0 %904
        %v907 = vcombine.low %v586, %v902
        %v908 = vcombine.high %v586, %v902
        %v910 = vunpack.c.l.s4 1983009808
        %v911 = vunpack.c.0.s8 %v910
        %v912 = vlaneseq
        %v913 = vshrl.u32 %v912, 7
        %v914 = vsub.s32 %v911, %v913
        %v915 = vrot.slane %v907, %v914
        %v917 = vunpack.c.l.s4 1983009808
        %v918 = vunpack.c.0.s8 %v917
        %v919 = vlaneseq
        %v920 = vshrl.u32 %v919, 7
        %v921 = vsub.s32 %v918, %v920
        %v922 = vrot.slane %v908, %v921
        %v923 = vcombine.low %v899, %v905
        %v924 = vcombine.high %v899, %v905
        %v926 = vunpack.c.l.s4 1983009808
        %v927 = vunpack.c.0.s8 %v926
        %v928 = vlaneseq
        %v929 = vshrl.u32 %v928, 7
        %v930 = vsub.s32 %v927, %v929
        %v931 = vrot.slane %v923, %v930
        %v933 = vunpack.c.l.s4 1983009808
        %v934 = vunpack.c.0.s8 %v933
        %v935 = vlaneseq
        %v936 = vshrl.u32 %v935, 7
        %v937 = vsub.s32 %v934, %v936
        %v938 = vrot.slane %v924, %v937
        %v939 = vcombine.low %v915, %v931
        %v940 = vcombine.high %v915, %v931
        %v942 = vunpack.c.l.s4 1934713408
        %v943 = vunpack.c.0.s8 %v942
        %v944 = vlaneseq
        %v945 = vshrl.u32 %v944, 7
        %v946 = vsub.s32 %v943, %v945
        %v947 = vrot.slane %v939, %v946
        %v949 = vunpack.c.l.s4 1934713408
        %v950 = vunpack.c.0.s8 %v949
        %v951 = vlaneseq
        %v952 = vshrl.u32 %v951, 7
        %v953 = vsub.s32 %v950, %v952
        %v954 = vrot.slane %v940, %v953
        %v955 = vcombine.low %v922, %v938
        %v956 = vcombine.high %v922, %v938
        %v958 = vunpack.c.l.s4 1934713408
        %v959 = vunpack.c.0.s8 %v958
        %v960 = vlaneseq
        %v961 = vshrl.u32 %v960, 7
        %v962 = vsub.s32 %v959, %v961
        %v963 = vrot.slane %v955, %v962
        %v965 = vunpack.c.l.s4 1934713408
        %v966 = vunpack.c.0.s8 %v965
        %v967 = vlaneseq
        %v968 = vshrl.u32 %v967, 7
        %v969 = vsub.s32 %v966, %v968
        %v970 = vrot.slane %v956, %v969
        %v971 = vcombine.high %v947, 0.0
        %v972 = vcombine.high %v954, 0.0
        %v973 = vcombine.high %v963, 0.0
        %v974 = vcombine.high %v970, 0.0
        %v975 = vcombine.low %v947, %v954
        %v977 = vunpack.c.l.s4 1983009808
        %v978 = vunpack.c.0.s8 %v977
        %v979 = vlaneseq
        %v980 = vshrl.u32 %v979, 7
        %v981 = vsub.s32 %v978, %v980
        %v982 = vrot.slane %v975, %v981
        %v983 = vcombine.low %v971, %v972
        %v985 = vunpack.c.l.s4 1983009808
        %v986 = vunpack.c.0.s8 %v985
        %v987 = vlaneseq
        %v988 = vshrl.u32 %v987, 7
        %v989 = vsub.s32 %v986, %v988
        %v990 = vrot.slane %v983, %v989
        %v991 = vcombine.low %v963, %v970
        %v993 = vunpack.c.l.s4 1983009808
        %v994 = vunpack.c.0.s8 %v993
        %v995 = vlaneseq
        %v996 = vshrl.u32 %v995, 7
        %v997 = vsub.s32 %v994, %v996
        %v998 = vrot.slane %v991, %v997
        %v999 = vcombine.low %v973, %v974
        %v1001 = vunpack.c.l.s4 1983009808
        %v1002 = vunpack.c.0.s8 %v1001
        %v1003 = vlaneseq
        %v1004 = vshrl.u32 %v1003, 7
        %v1005 = vsub.s32 %v1002, %v1004
        %v1006 = vrot.slane %v999, %v1005
        %v1007 = vcombine.low %v982, %v990
        %v1008 = vcombine.high %v982, %v990
        %v1010 = vunpack.c.l.s4 1934713408
        %v1011 = vunpack.c.0.s8 %v1010
        %v1012 = vlaneseq
        %v1013 = vshrl.u32 %v1012, 7
        %v1014 = vsub.s32 %v1011, %v1013
        %v1015 = vrot.slane %v1007, %v1014
        %v1017 = vunpack.c.l.s4 1934713408
        %v1018 = vunpack.c.0.s8 %v1017
        %v1019 = vlaneseq
        %v1020 = vshrl.u32 %v1019, 7
        %v1021 = vsub.s32 %v1018, %v1020
        %v1022 = vrot.slane %v1008, %v1021
        %v1023 = vcombine.low %v998, %v1006
        %v1024 = vcombine.high %v998, %v1006
        %v1026 = vunpack.c.l.s4 1934713408
        %v1027 = vunpack.c.0.s8 %v1026
        %v1028 = vlaneseq
        %v1029 = vshrl.u32 %v1028, 7
        %v1030 = vsub.s32 %v1027, %v1029
        %v1031 = vrot.slane %v1023, %v1030
        %v1033 = vunpack.c.l.s4 1934713408
        %v1034 = vunpack.c.0.s8 %v1033
        %v1035 = vlaneseq
        %v1036 = vshrl.u32 %v1035, 7
        %v1037 = vsub.s32 %v1034, %v1036
        %v1038 = vrot.slane %v1024, %v1037
        %v1039 = vcombine.low %v1015, %v1031
        %v1040 = vcombine.high %v1015, %v1031
        %v1041 = vcombine.low %v1022, %v1038
        %v1042 = vcombine.high %v1022, %v1038
        %v1043 = vpack.c.bf16 %v1039, %v1039
        %v1044 = vpack.c.bf16 %v1040, %v1040
        %v1045 = vpack.c.bf16 %v1041, %v1041
        %v1046 = vpack.c.bf16 %v1042, %v1042
        %vm1047 = vcmask 130048
        %v1049 = vsel %vm1047, %v741, 0
        %v1052 = vsel %vm1047, %v893, 0
        %1054 = vmatprep.subr.bf16.mxu0 0
        %1055 = vmatpush1.bf16.xpose.msra.mxu0 %v1052
        %1056 = vmatprep.subr.bf16.mxu0 0
        %1057 = vmatpush1.bf16.xpose.msra.mxu0 0
        %1058 = vmatprep.subr.bf16.mxu0 0
        %1059 = vmatpush1.bf16.xpose.msra.mxu0 0
        %1060 = vmatprep.subr.bf16.mxu0 0
        %1061 = vmatpush1.bf16.xpose.msra.mxu0 0
        %1062 = vmatprep.subr.bf16.mxu0 0
        %1063 = vmatpush1.bf16.xpose.msra.mxu0 0
        %1064 = vmatprep.subr.bf16.mxu0 0
        %1065 = vmatpush1.bf16.xpose.msra.mxu0 0
        %1066 = vmatprep.subr.bf16.mxu0 0
        %1067 = vmatpush1.bf16.xpose.msra.mxu0 0
        %1068 = vmatprep.subr.bf16.mxu0 0
        %1069 = vmatpush1.bf16.xpose.msra.mxu0 0
        %1070 = vmatprep.subr.bf16.mxu0 0
        %1071 = vmatpush1.bf16.xpose.msra.mxu0 0
        %1072 = vmatprep.subr.bf16.mxu0 0
        %1073 = vmatpush1.bf16.xpose.msra.mxu0 0
        %1074 = vmatprep.subr.bf16.mxu0 0
        %1075 = vmatpush1.bf16.xpose.msra.mxu0 0
        %1076 = vmatprep.subr.bf16.mxu0 0
        %1077 = vmatpush1.bf16.xpose.msra.mxu0 0
        %1078 = vmatprep.subr.bf16.mxu0 0
        %1079 = vmatpush1.bf16.xpose.msra.mxu0 0
        %1080 = vmatprep.subr.bf16.mxu0 0
        %1081 = vmatpush1.bf16.xpose.msra.mxu0 0
        %1082 = vmatprep.subr.bf16.mxu0 0
        %1083 = vmatpush1.bf16.xpose.msra.mxu0 0
        %1084 = vmatprep.subr.bf16.mxu0 0
        %1085 = vmatpush1.bf16.xpose.msra.mxu0 0
        %1086 = vmatprep.mubr.bf16.mxu0 0
        %1087 = vmatmul.mubr.bf16.gmra.mrb[0].mxu0 %v1049
        %v1088 = vpop.f32.mrb[0].mxu0
        %v1089 = vadd.f32 0.0, %v1088
        %v1090 = vpop.f32.mrb[0].mxu0
        %v1091 = vpop.f32.mrb[0].mxu0
        %v1092 = vpop.f32.mrb[0].mxu0
        %1093 = vdwg.mxu0
        %v1095 = vsel %vm1047, %v742, 0
        %v1098 = vsel %vm1047, %v894, 0
        %1100 = vmatprep.subr.bf16.mxu0 0
        %1101 = vmatpush1.bf16.xpose.msra.mxu0 %v1098
        %1102 = vmatprep.subr.bf16.mxu0 0
        %1103 = vmatpush1.bf16.xpose.msra.mxu0 0
        %1104 = vmatprep.subr.bf16.mxu0 0
        %1105 = vmatpush1.bf16.xpose.msra.mxu0 0
        %1106 = vmatprep.subr.bf16.mxu0 0
        %1107 = vmatpush1.bf16.xpose.msra.mxu0 0
        %1108 = vmatprep.subr.bf16.mxu0 0
        %1109 = vmatpush1.bf16.xpose.msra.mxu0 0
        %1110 = vmatprep.subr.bf16.mxu0 0
        %1111 = vmatpush1.bf16.xpose.msra.mxu0 0
        %1112 = vmatprep.subr.bf16.mxu0 0
        %1113 = vmatpush1.bf16.xpose.msra.mxu0 0
        %1114 = vmatprep.subr.bf16.mxu0 0
        %1115 = vmatpush1.bf16.xpose.msra.mxu0 0
        %1116 = vmatprep.subr.bf16.mxu0 0
        %1117 = vmatpush1.bf16.xpose.msra.mxu0 0
        %1118 = vmatprep.subr.bf16.mxu0 0
        %1119 = vmatpush1.bf16.xpose.msra.mxu0 0
        %1120 = vmatprep.subr.bf16.mxu0 0
        %1121 = vmatpush1.bf16.xpose.msra.mxu0 0
        %1122 = vmatprep.subr.bf16.mxu0 0
        %1123 = vmatpush1.bf16.xpose.msra.mxu0 0
        %1124 = vmatprep.subr.bf16.mxu0 0
        %1125 = vmatpush1.bf16.xpose.msra.mxu0 0
        %1126 = vmatprep.subr.bf16.mxu0 0
        %1127 = vmatpush1.bf16.xpose.msra.mxu0 0
        %1128 = vmatprep.subr.bf16.mxu0 0
        %1129 = vmatpush1.bf16.xpose.msra.mxu0 0
        %1130 = vmatprep.subr.bf16.mxu0 0
        %1131 = vmatpush1.bf16.xpose.msra.mxu0 0
        %1132 = vmatprep.mubr.bf16.mxu0 0
        %1133 = vmatmul.mubr.bf16.gmra.mrb[0].mxu0 %v1095
        %v1134 = vpop.f32.mrb[0].mxu0
        %v1135 = vadd.f32 0.0, %v1134
        %v1136 = vpop.f32.mrb[0].mxu0
        %v1137 = vpop.f32.mrb[0].mxu0
        %v1138 = vpop.f32.mrb[0].mxu0
        %1139 = vdwg.mxu0
        %v1141 = vsel %vm1047, %v743, 0
        %v1144 = vsel %vm1047, %v895, 0
        %1146 = vmatprep.subr.bf16.mxu0 0
        %1147 = vmatpush1.bf16.xpose.msra.mxu0 %v1144
        %1148 = vmatprep.subr.bf16.mxu0 0
        %1149 = vmatpush1.bf16.xpose.msra.mxu0 0
        %1150 = vmatprep.subr.bf16.mxu0 0
        %1151 = vmatpush1.bf16.xpose.msra.mxu0 0
        %1152 = vmatprep.subr.bf16.mxu0 0
        %1153 = vmatpush1.bf16.xpose.msra.mxu0 0
        %1154 = vmatprep.subr.bf16.mxu0 0
        %1155 = vmatpush1.bf16.xpose.msra.mxu0 0
        %1156 = vmatprep.subr.bf16.mxu0 0
        %1157 = vmatpush1.bf16.xpose.msra.mxu0 0
        %1158 = vmatprep.subr.bf16.mxu0 0
        %1159 = vmatpush1.bf16.xpose.msra.mxu0 0
        %1160 = vmatprep.subr.bf16.mxu0 0
        %1161 = vmatpush1.bf16.xpose.msra.mxu0 0
        %1162 = vmatprep.subr.bf16.mxu0 0
        %1163 = vmatpush1.bf16.xpose.msra.mxu0 0
        %1164 = vmatprep.subr.bf16.mxu0 0
        %1165 = vmatpush1.bf16.xpose.msra.mxu0 0
        %1166 = vmatprep.subr.bf16.mxu0 0
        %1167 = vmatpush1.bf16.xpose.msra.mxu0 0
        %1168 = vmatprep.subr.bf16.mxu0 0
        %1169 = vmatpush1.bf16.xpose.msra.mxu0 0
        %1170 = vmatprep.subr.bf16.mxu0 0
        %1171 = vmatpush1.bf16.xpose.msra.mxu0 0
        %1172 = vmatprep.subr.bf16.mxu0 0
        %1173 = vmatpush1.bf16.xpose.msra.mxu0 0
        %1174 = vmatprep.subr.bf16.mxu0 0
        %1175 = vmatpush1.bf16.xpose.msra.mxu0 0
        %1176 = vmatprep.subr.bf16.mxu0 0
        %1177 = vmatpush1.bf16.xpose.msra.mxu0 0
        %1178 = vmatprep.mubr.bf16.mxu0 0
        %1179 = vmatmul.mubr.bf16.gmra.mrb[0].mxu0 %v1141
        %v1180 = vpop.f32.mrb[0].mxu0
        %v1181 = vadd.f32 0.0, %v1180
        %v1182 = vpop.f32.mrb[0].mxu0
        %v1183 = vpop.f32.mrb[0].mxu0
        %v1184 = vpop.f32.mrb[0].mxu0
        %1185 = vdwg.mxu0
        %v1187 = vsel %vm1047, %v744, 0
        %v1190 = vsel %vm1047, %v896, 0
        %1192 = vmatprep.subr.bf16.mxu0 0
        %1193 = vmatpush1.bf16.xpose.msra.mxu0 %v1190
        %1194 = vmatprep.subr.bf16.mxu0 0
        %1195 = vmatpush1.bf16.xpose.msra.mxu0 0
        %1196 = vmatprep.subr.bf16.mxu0 0
        %1197 = vmatpush1.bf16.xpose.msra.mxu0 0
        %1198 = vmatprep.subr.bf16.mxu0 0
        %1199 = vmatpush1.bf16.xpose.msra.mxu0 0
        %1200 = vmatprep.subr.bf16.mxu0 0
        %1201 = vmatpush1.bf16.xpose.msra.mxu0 0
        %1202 = vmatprep.subr.bf16.mxu0 0
        %1203 = vmatpush1.bf16.xpose.msra.mxu0 0
        %1204 = vmatprep.subr.bf16.mxu0 0
        %1205 = vmatpush1.bf16.xpose.msra.mxu0 0
        %1206 = vmatprep.subr.bf16.mxu0 0
        %1207 = vmatpush1.bf16.xpose.msra.mxu0 0
        %1208 = vmatprep.subr.bf16.mxu0 0
        %1209 = vmatpush1.bf16.xpose.msra.mxu0 0
        %1210 = vmatprep.subr.bf16.mxu0 0
        %1211 = vmatpush1.bf16.xpose.msra.mxu0 0
        %1212 = vmatprep.subr.bf16.mxu0 0
        %1213 = vmatpush1.bf16.xpose.msra.mxu0 0
        %1214 = vmatprep.subr.bf16.mxu0 0
        %1215 = vmatpush1.bf16.xpose.msra.mxu0 0
        %1216 = vmatprep.subr.bf16.mxu0 0
        %1217 = vmatpush1.bf16.xpose.msra.mxu0 0
        %1218 = vmatprep.subr.bf16.mxu0 0
        %1219 = vmatpush1.bf16.xpose.msra.mxu0 0
        %1220 = vmatprep.subr.bf16.mxu0 0
        %1221 = vmatpush1.bf16.xpose.msra.mxu0 0
        %1222 = vmatprep.subr.bf16.mxu0 0
        %1223 = vmatpush1.bf16.xpose.msra.mxu0 0
        %1224 = vmatprep.mubr.bf16.mxu0 0
        %1225 = vmatmul.mubr.bf16.gmra.mrb[0].mxu0 %v1187
        %v1226 = vpop.f32.mrb[0].mxu0
        %v1227 = vadd.f32 0.0, %v1226
        %v1228 = vpop.f32.mrb[0].mxu0
        %v1229 = vpop.f32.mrb[0].mxu0
        %v1230 = vpop.f32.mrb[0].mxu0
        %1231 = vdwg.mxu0
        %v1232 = vsel %vm594, 1, 0
        %vm1233 = vcmp.eq.s32.totalorder %v1232, 1
        %v1234 = vsel %vm1233, %v1089, -1e+30
        %v1235 = vsel %vm1233, %v1135, -1e+30
        %v1236 = vsel %vm1233, %v1181, -1e+30
        %v1237 = vsel %vm1233, %v1227, -1e+30
        %vm1238 = vcmask 64512
        %v1239 = vsel %vm1238, %v1234, -inf
        %1240 = vmax.xlane.f32.xlu0 %v1239
        %v1241 = vpop.xlane.xlu0 %1240
        %v1242 = vsel %vm1238, %v1235, -inf
        %1243 = vmax.xlane.f32.xlu0 %v1242
        %v1244 = vpop.xlane.xlu0 %1243
        %v1245 = vsel %vm1238, %v1236, -inf
        %1246 = vmax.xlane.f32.xlu0 %v1245
        %v1247 = vpop.xlane.xlu0 %1246
        %v1248 = vsel %vm1238, %v1237, -inf
        %1249 = vmax.xlane.f32.xlu0 %v1248
        %v1250 = vpop.xlane.xlu0 %1249
        %v1251 = vsub.f32 %v1234, %v1241
        %v1252 = vsub.f32 %v1235, %v1244
        %v1253 = vsub.f32 %v1236, %v1247
        %v1254 = vsub.f32 %v1237, %v1250
        %v1255 = vmul.f32 %v1251, 1.442695
        %v1256 = vpow.pop %v1255
        %v1257 = vmul.f32 %v1252, 1.442695
        %v1258 = vpow.pop %v1257
        %v1259 = vmul.f32 %v1253, 1.442695
        %v1260 = vpow.pop %v1259
        %v1261 = vmul.f32 %v1254, 1.442695
        %v1262 = vpow.pop %v1261
        %v1263 = vsel %vm1238, %v1256, 0.0
        %1264 = vadd.xlane.f32.xlu0 %v1263
        %v1265 = vpop.xlane.xlu0 %1264
        %v1266 = vsel %vm1238, %v1258, 0.0
        %1267 = vadd.xlane.f32.xlu0 %v1266
        %v1268 = vpop.xlane.xlu0 %1267
        %v1269 = vsel %vm1238, %v1260, 0.0
        %1270 = vadd.xlane.f32.xlu0 %v1269
        %v1271 = vpop.xlane.xlu0 %1270
        %v1272 = vsel %vm1238, %v1262, 0.0
        %1273 = vadd.xlane.f32.xlu0 %v1272
        %v1274 = vpop.xlane.xlu0 %1273
        %v1275 = vrcp.pop %v1265
        %v1276 = vrcp.pop %v1268
        %v1277 = vrcp.pop %v1271
        %v1278 = vrcp.pop %v1274
        %v1279 = vmul.f32 %v1256, %v1275
        %v1280 = vmul.f32 %v1258, %v1276
        %v1281 = vmul.f32 %v1260, %v1277
        %v1282 = vmul.f32 %v1262, %v1278
        %v1283 = vpack.c.bf16 %v1279, %v1279
        %v1284 = vpack.c.bf16 %v1280, %v1280
        %v1285 = vpack.c.bf16 %v1281, %v1281
        %v1286 = vpack.c.bf16 %v1282, %v1282
        %v1288 = vsel %vm1238, %v1283, 0
        %vm1290 = vcmask 1043456
        %v1292 = vsel %vm1290, %v1043, 0
        %1294 = vmatprep.subr.bf16.mxu0 0
        %1295 = vmatpush1.bf16.msra.mxu0 %v1292
        %1296 = vmatprep.subr.bf16.mxu0 0
        %1297 = vmatpush1.bf16.msra.mxu0 0
        %1298 = vmatprep.subr.bf16.mxu0 0
        %1299 = vmatpush1.bf16.msra.mxu0 0
        %1300 = vmatprep.subr.bf16.mxu0 0
        %1301 = vmatpush1.bf16.msra.mxu0 0
        %1302 = vmatprep.subr.bf16.mxu0 0
        %1303 = vmatpush1.bf16.msra.mxu0 0
        %1304 = vmatprep.subr.bf16.mxu0 0
        %1305 = vmatpush1.bf16.msra.mxu0 0
        %1306 = vmatprep.subr.bf16.mxu0 0
        %1307 = vmatpush1.bf16.msra.mxu0 0
        %1308 = vmatprep.subr.bf16.mxu0 0
        %1309 = vmatpush1.bf16.msra.mxu0 0
        %1310 = vmatprep.subr.bf16.mxu0 0
        %1311 = vmatpush1.bf16.msra.mxu0 0
        %1312 = vmatprep.subr.bf16.mxu0 0
        %1313 = vmatpush1.bf16.msra.mxu0 0
        %1314 = vmatprep.subr.bf16.mxu0 0
        %1315 = vmatpush1.bf16.msra.mxu0 0
        %1316 = vmatprep.subr.bf16.mxu0 0
        %1317 = vmatpush1.bf16.msra.mxu0 0
        %1318 = vmatprep.subr.bf16.mxu0 0
        %1319 = vmatpush1.bf16.msra.mxu0 0
        %1320 = vmatprep.subr.bf16.mxu0 0
        %1321 = vmatpush1.bf16.msra.mxu0 0
        %1322 = vmatprep.subr.bf16.mxu0 0
        %1323 = vmatpush1.bf16.msra.mxu0 0
        %1324 = vmatprep.subr.bf16.mxu0 0
        %1325 = vmatpush1.bf16.msra.mxu0 0
        %1326 = vmatprep.mubr.bf16.mxu0 0
        %1327 = vmatmul.mubr.bf16.gmra.mrb[0].mxu0 %v1288
        %v1328 = vpop.f32.mrb[0].mxu0
        %v1329 = vadd.f32 0.0, %v1328
        %v1330 = vpop.f32.mrb[0].mxu0
        %v1331 = vpop.f32.mrb[0].mxu0
        %v1332 = vpop.f32.mrb[0].mxu0
        %1333 = vdwg.mxu0
        %v1335 = vsel %vm1238, %v1284, 0
        %v1338 = vsel %vm1290, %v1044, 0
        %1340 = vmatprep.subr.bf16.mxu0 0
        %1341 = vmatpush1.bf16.msra.mxu0 %v1338
        %1342 = vmatprep.subr.bf16.mxu0 0
        %1343 = vmatpush1.bf16.msra.mxu0 0
        %1344 = vmatprep.subr.bf16.mxu0 0
        %1345 = vmatpush1.bf16.msra.mxu0 0
        %1346 = vmatprep.subr.bf16.mxu0 0
        %1347 = vmatpush1.bf16.msra.mxu0 0
        %1348 = vmatprep.subr.bf16.mxu0 0
        %1349 = vmatpush1.bf16.msra.mxu0 0
        %1350 = vmatprep.subr.bf16.mxu0 0
        %1351 = vmatpush1.bf16.msra.mxu0 0
        %1352 = vmatprep.subr.bf16.mxu0 0
        %1353 = vmatpush1.bf16.msra.mxu0 0
        %1354 = vmatprep.subr.bf16.mxu0 0
        %1355 = vmatpush1.bf16.msra.mxu0 0
        %1356 = vmatprep.subr.bf16.mxu0 0
        %1357 = vmatpush1.bf16.msra.mxu0 0
        %1358 = vmatprep.subr.bf16.mxu0 0
        %1359 = vmatpush1.bf16.msra.mxu0 0
        %1360 = vmatprep.subr.bf16.mxu0 0
        %1361 = vmatpush1.bf16.msra.mxu0 0
        %1362 = vmatprep.subr.bf16.mxu0 0
        %1363 = vmatpush1.bf16.msra.mxu0 0
        %1364 = vmatprep.subr.bf16.mxu0 0
        %1365 = vmatpush1.bf16.msra.mxu0 0
        %1366 = vmatprep.subr.bf16.mxu0 0
        %1367 = vmatpush1.bf16.msra.mxu0 0
        %1368 = vmatprep.subr.bf16.mxu0 0
        %1369 = vmatpush1.bf16.msra.mxu0 0
        %1370 = vmatprep.subr.bf16.mxu0 0
        %1371 = vmatpush1.bf16.msra.mxu0 0
        %1372 = vmatprep.mubr.bf16.mxu0 0
        %1373 = vmatmul.mubr.bf16.gmra.mrb[0].mxu0 %v1335
        %v1374 = vpop.f32.mrb[0].mxu0
        %v1375 = vadd.f32 0.0, %v1374
        %v1376 = vpop.f32.mrb[0].mxu0
        %v1377 = vpop.f32.mrb[0].mxu0
        %v1378 = vpop.f32.mrb[0].mxu0
        %1379 = vdwg.mxu0
        %v1381 = vsel %vm1238, %v1285, 0
        %v1384 = vsel %vm1290, %v1045, 0
        %1386 = vmatprep.subr.bf16.mxu0 0
        %1387 = vmatpush1.bf16.msra.mxu0 %v1384
        %1388 = vmatprep.subr.bf16.mxu0 0
        %1389 = vmatpush1.bf16.msra.mxu0 0
        %1390 = vmatprep.subr.bf16.mxu0 0
        %1391 = vmatpush1.bf16.msra.mxu0 0
        %1392 = vmatprep.subr.bf16.mxu0 0
        %1393 = vmatpush1.bf16.msra.mxu0 0
        %1394 = vmatprep.subr.bf16.mxu0 0
        %1395 = vmatpush1.bf16.msra.mxu0 0
        %1396 = vmatprep.subr.bf16.mxu0 0
        %1397 = vmatpush1.bf16.msra.mxu0 0
        %1398 = vmatprep.subr.bf16.mxu0 0
        %1399 = vmatpush1.bf16.msra.mxu0 0
        %1400 = vmatprep.subr.bf16.mxu0 0
        %1401 = vmatpush1.bf16.msra.mxu0 0
        %1402 = vmatprep.subr.bf16.mxu0 0
        %1403 = vmatpush1.bf16.msra.mxu0 0
        %1404 = vmatprep.subr.bf16.mxu0 0
        %1405 = vmatpush1.bf16.msra.mxu0 0
        %1406 = vmatprep.subr.bf16.mxu0 0
        %1407 = vmatpush1.bf16.msra.mxu0 0
        %1408 = vmatprep.subr.bf16.mxu0 0
        %1409 = vmatpush1.bf16.msra.mxu0 0
        %1410 = vmatprep.subr.bf16.mxu0 0
        %1411 = vmatpush1.bf16.msra.mxu0 0
        %1412 = vmatprep.subr.bf16.mxu0 0
        %1413 = vmatpush1.bf16.msra.mxu0 0
        %1414 = vmatprep.subr.bf16.mxu0 0
        %1415 = vmatpush1.bf16.msra.mxu0 0
        %1416 = vmatprep.subr.bf16.mxu0 0
        %1417 = vmatpush1.bf16.msra.mxu0 0
        %1418 = vmatprep.mubr.bf16.mxu0 0
        %1419 = vmatmul.mubr.bf16.gmra.mrb[0].mxu0 %v1381
        %v1420 = vpop.f32.mrb[0].mxu0
        %v1421 = vadd.f32 0.0, %v1420
        %v1422 = vpop.f32.mrb[0].mxu0
        %v1423 = vpop.f32.mrb[0].mxu0
        %v1424 = vpop.f32.mrb[0].mxu0
        %1425 = vdwg.mxu0
        %v1427 = vsel %vm1238, %v1286, 0
        %v1430 = vsel %vm1290, %v1046, 0
        %1432 = vmatprep.subr.bf16.mxu0 0
        %1433 = vmatpush1.bf16.msra.mxu0 %v1430
        %1434 = vmatprep.subr.bf16.mxu0 0
        %1435 = vmatpush1.bf16.msra.mxu0 0
        %1436 = vmatprep.subr.bf16.mxu0 0
        %1437 = vmatpush1.bf16.msra.mxu0 0
        %1438 = vmatprep.subr.bf16.mxu0 0
        %1439 = vmatpush1.bf16.msra.mxu0 0
        %1440 = vmatprep.subr.bf16.mxu0 0
        %1441 = vmatpush1.bf16.msra.mxu0 0
        %1442 = vmatprep.subr.bf16.mxu0 0
        %1443 = vmatpush1.bf16.msra.mxu0 0
        %1444 = vmatprep.subr.bf16.mxu0 0
        %1445 = vmatpush1.bf16.msra.mxu0 0
        %1446 = vmatprep.subr.bf16.mxu0 0
        %1447 = vmatpush1.bf16.msra.mxu0 0
        %1448 = vmatprep.subr.bf16.mxu0 0
        %1449 = vmatpush1.bf16.msra.mxu0 0
        %1450 = vmatprep.subr.bf16.mxu0 0
        %1451 = vmatpush1.bf16.msra.mxu0 0
        %1452 = vmatprep.subr.bf16.mxu0 0
        %1453 = vmatpush1.bf16.msra.mxu0 0
        %1454 = vmatprep.subr.bf16.mxu0 0
        %1455 = vmatpush1.bf16.msra.mxu0 0
        %1456 = vmatprep.subr.bf16.mxu0 0
        %1457 = vmatpush1.bf16.msra.mxu0 0
        %1458 = vmatprep.subr.bf16.mxu0 0
        %1459 = vmatpush1.bf16.msra.mxu0 0
        %1460 = vmatprep.subr.bf16.mxu0 0
        %1461 = vmatpush1.bf16.msra.mxu0 0
        %1462 = vmatprep.subr.bf16.mxu0 0
        %1463 = vmatpush1.bf16.msra.mxu0 0
        %1464 = vmatprep.mubr.bf16.mxu0 0
        %1465 = vmatmul.mubr.bf16.gmra.mrb[0].mxu0 %v1427
        %v1466 = vpop.f32.mrb[0].mxu0
        %v1467 = vadd.f32 0.0, %v1466
        %v1468 = vpop.f32.mrb[0].mxu0
        %v1469 = vpop.f32.mrb[0].mxu0
        %v1470 = vpop.f32.mrb[0].mxu0
        %1471 = vdwg.mxu0
        %v1472 = vcombine.low %v1329, %v1421
        %v1473 = vcombine.high %v1329, %v1421
        %v1475 = vunpack.c.l.s4 1983009808
        %v1476 = vunpack.c.0.s8 %v1475
        %v1477 = vlaneseq
        %v1478 = vshrl.u32 %v1477, 7
        %v1479 = vsub.s32 %v1476, %v1478
        %v1480 = vrot.slane %v1472, %v1479
        %v1482 = vunpack.c.l.s4 1983009808
        %v1483 = vunpack.c.0.s8 %v1482
        %v1484 = vlaneseq
        %v1485 = vshrl.u32 %v1484, 7
        %v1486 = vsub.s32 %v1483, %v1485
        %v1487 = vrot.slane %v1473, %v1486
        %v1488 = vcombine.low %v1375, %v1467
        %v1489 = vcombine.high %v1375, %v1467
        %v1491 = vunpack.c.l.s4 1983009808
        %v1492 = vunpack.c.0.s8 %v1491
        %v1493 = vlaneseq
        %v1494 = vshrl.u32 %v1493, 7
        %v1495 = vsub.s32 %v1492, %v1494
        %v1496 = vrot.slane %v1488, %v1495
        %v1498 = vunpack.c.l.s4 1983009808
        %v1499 = vunpack.c.0.s8 %v1498
        %v1500 = vlaneseq
        %v1501 = vshrl.u32 %v1500, 7
        %v1502 = vsub.s32 %v1499, %v1501
        %v1503 = vrot.slane %v1489, %v1502
        %v1504 = vcombine.low %v1480, %v1496
        %v1505 = vcombine.high %v1480, %v1496
        %v1507 = vunpack.c.l.s4 1934713408
        %v1508 = vunpack.c.0.s8 %v1507
        %v1509 = vlaneseq
        %v1510 = vshrl.u32 %v1509, 7
        %v1511 = vsub.s32 %v1508, %v1510
        %v1512 = vrot.slane %v1504, %v1511
        %v1514 = vunpack.c.l.s4 1934713408
        %v1515 = vunpack.c.0.s8 %v1514
        %v1516 = vlaneseq
        %v1517 = vshrl.u32 %v1516, 7
        %v1518 = vsub.s32 %v1515, %v1517
        %v1519 = vrot.slane %v1505, %v1518
        %v1520 = vcombine.low %v1487, %v1503
        %v1521 = vcombine.high %v1487, %v1503
        %v1523 = vunpack.c.l.s4 1934713408
        %v1524 = vunpack.c.0.s8 %v1523
        %v1525 = vlaneseq
        %v1526 = vshrl.u32 %v1525, 7
        %v1527 = vsub.s32 %v1524, %v1526
        %v1528 = vrot.slane %v1520, %v1527
        %v1530 = vunpack.c.l.s4 1934713408
        %v1531 = vunpack.c.0.s8 %v1530
        %v1532 = vlaneseq
        %v1533 = vshrl.u32 %v1532, 7
        %v1534 = vsub.s32 %v1531, %v1533
        %v1535 = vrot.slane %v1521, %v1534
        %v1536 = vcombine.high %v1512, 0.0
        %v1537 = vcombine.high %v1519, 0.0
        %v1538 = vcombine.high %v1528, 0.0
        %v1539 = vcombine.high %v1535, 0.0
        %v1540 = vcombine.low %v1512, %v1519
        %v1542 = vunpack.c.l.s4 1983009808
        %v1543 = vunpack.c.0.s8 %v1542
        %v1544 = vlaneseq
        %v1545 = vshrl.u32 %v1544, 7
        %v1546 = vsub.s32 %v1543, %v1545
        %v1547 = vrot.slane %v1540, %v1546
        %v1548 = vcombine.low %v1536, %v1537
        %v1550 = vunpack.c.l.s4 1983009808
        %v1551 = vunpack.c.0.s8 %v1550
        %v1552 = vlaneseq
        %v1553 = vshrl.u32 %v1552, 7
        %v1554 = vsub.s32 %v1551, %v1553
        %v1555 = vrot.slane %v1548, %v1554
        %v1556 = vcombine.low %v1528, %v1535
        %v1558 = vunpack.c.l.s4 1983009808
        %v1559 = vunpack.c.0.s8 %v1558
        %v1560 = vlaneseq
        %v1561 = vshrl.u32 %v1560, 7
        %v1562 = vsub.s32 %v1559, %v1561
        %v1563 = vrot.slane %v1556, %v1562
        %v1564 = vcombine.low %v1538, %v1539
        %v1566 = vunpack.c.l.s4 1983009808
        %v1567 = vunpack.c.0.s8 %v1566
        %v1568 = vlaneseq
        %v1569 = vshrl.u32 %v1568, 7
        %v1570 = vsub.s32 %v1567, %v1569
        %v1571 = vrot.slane %v1564, %v1570
        %v1572 = vcombine.low %v1547, %v1555
        %v1573 = vcombine.high %v1547, %v1555
        %v1575 = vunpack.c.l.s4 1934713408
        %v1576 = vunpack.c.0.s8 %v1575
        %v1577 = vlaneseq
        %v1578 = vshrl.u32 %v1577, 7
        %v1579 = vsub.s32 %v1576, %v1578
        %v1580 = vrot.slane %v1572, %v1579
        %v1582 = vunpack.c.l.s4 1934713408
        %v1583 = vunpack.c.0.s8 %v1582
        %v1584 = vlaneseq
        %v1585 = vshrl.u32 %v1584, 7
        %v1586 = vsub.s32 %v1583, %v1585
        %v1587 = vrot.slane %v1573, %v1586
        %v1588 = vcombine.low %v1563, %v1571
        %v1589 = vcombine.high %v1563, %v1571
        %v1591 = vunpack.c.l.s4 1934713408
        %v1592 = vunpack.c.0.s8 %v1591
        %v1593 = vlaneseq
        %v1594 = vshrl.u32 %v1593, 7
        %v1595 = vsub.s32 %v1592, %v1594
        %v1596 = vrot.slane %v1588, %v1595
        %v1598 = vunpack.c.l.s4 1934713408
        %v1599 = vunpack.c.0.s8 %v1598
        %v1600 = vlaneseq
        %v1601 = vshrl.u32 %v1600, 7
        %v1602 = vsub.s32 %v1599, %v1601
        %v1603 = vrot.slane %v1589, %v1602
        %v1604 = vcombine.low %v1580, %v1596
        %v1605 = vcombine.high %v1580, %v1596
        %v1606 = vcombine.low %v1587, %v1603
        %v1607 = vcombine.high %v1587, %v1603
        %1609 = vrot.lane.b32.xlu0 %v1605, 16
        %v1610 = vpop.permute.xlu0 %1609
        %1613 = vrot.lane.b32.xlu0 %v1606, 32
        %v1614 = vpop.permute.xlu0 %1613
        %1617 = vrot.lane.b32.xlu0 %v1607, 48
        %v1618 = vpop.permute.xlu0 %1617
        %v1620 = vsel %vm1047, %v1604, %v1610
        %vm1621 = vcmask 261120
        %v1622 = vsel %vm1621, %v1620, %v1614
        %vm1623 = vcmask 392192
        %v1624 = vsel %vm1623, %v1622, %v1618
        %v1625 = vpack.c.bf16 %v1624, %v1624
        %v1627 = vlaneseq
        %v1628 = vshrl.u32 %v1627, 7
        %v1629 = vsub.s32 0, %v1628
        %v1630 = vrot.slane %v267, %v1629
        %v1631 = vlaneseq
        %v1632 = vshrl.u32 %v1631, 7
        %v1633 = vsub.s32 1, %v1632
        %v1634 = vrot.slane %v267, %v1633
        %v1635 = vlaneseq
        %v1636 = vshrl.u32 %v1635, 7
        %v1637 = vsub.s32 2, %v1636
        %v1638 = vrot.slane %v267, %v1637
        %v1658 = vunpack.c.l.b16 %v251
        %v1659 = vunpack.c.h.b16 %v251
        %v1660 = vunpack.c.l.b16 %v252
        %v1661 = vunpack.c.l.b16 %v253
        %v1662 = vunpack.c.h.b16 %v253
        %v1663 = vunpack.c.l.b16 %v254
        %v1664 = vunpack.c.l.b16 %v255
        %v1665 = vunpack.c.h.b16 %v255
        %v1666 = vunpack.c.l.b16 %v256
        %v1667 = vunpack.c.l.b16 %v257
        %v1668 = vunpack.c.h.b16 %v257
        %v1669 = vunpack.c.l.b16 %v258
        %v1670 = vunpack.c.l.b16 %v259
        %v1671 = vunpack.c.h.b16 %v259
        %v1672 = vunpack.c.l.b16 %v260
        %v1673 = vunpack.c.l.b16 %v261
        %v1674 = vunpack.c.h.b16 %v261
        %v1675 = vunpack.c.l.b16 %v262
        %v1676 = vunpack.c.l.b16 %v263
        %v1677 = vunpack.c.h.b16 %v263
        %v1678 = vunpack.c.l.b16 %v264
        %v1679 = vunpack.c.l.b16 %v265
        %v1680 = vunpack.c.h.b16 %v265
        %v1681 = vunpack.c.l.b16 %v266
        %v1682 = vpack.c.b16 %v1661, %v1658
        %v1683 = vpack.c.b16 %v1662, %v1659
        %v1684 = vpack.c.b16 %v1663, %v1660
        %v1685 = vpack.c.b16 %v1667, %v1664
        %v1686 = vpack.c.b16 %v1668, %v1665
        %v1687 = vpack.c.b16 %v1669, %v1666
        %v1688 = vpack.c.b16 %v1673, %v1670
        %v1689 = vpack.c.b16 %v1674, %v1671
        %v1690 = vpack.c.b16 %v1675, %v1672
        %v1691 = vpack.c.b16 %v1679, %v1676
        %v1692 = vpack.c.b16 %v1680, %v1677
        %v1693 = vpack.c.b16 %v1681, %v1678
        %vm1706 = vcmask 523264
        %v1708 = vsel %vm1706, %v1625, 0
        %1710 = vmatprep.subr.bf16.mxu0 %v1683
        %1711 = vmatpush1.bf16.msra.mxu0 %v1682
        %1712 = vmatprep.subr.bf16.mxu0 %v1686
        %1713 = vmatpush1.bf16.msra.mxu0 %v1685
        %1714 = vmatprep.subr.bf16.mxu0 %v1689
        %1715 = vmatpush1.bf16.msra.mxu0 %v1688
        %1716 = vmatprep.subr.bf16.mxu0 %v1692
        %1717 = vmatpush1.bf16.msra.mxu0 %v1691
        %1718 = vmatprep.subr.bf16.mxu0 0
        %1719 = vmatpush1.bf16.msra.mxu0 0
        %1720 = vmatprep.subr.bf16.mxu0 0
        %1721 = vmatpush1.bf16.msra.mxu0 0
        %1722 = vmatprep.subr.bf16.mxu0 0
        %1723 = vmatpush1.bf16.msra.mxu0 0
        %1724 = vmatprep.subr.bf16.mxu0 0
        %1725 = vmatpush1.bf16.msra.mxu0 0
        %1726 = vmatprep.subr.bf16.mxu0 0
        %1727 = vmatpush1.bf16.msra.mxu0 0
        %1728 = vmatprep.subr.bf16.mxu0 0
        %1729 = vmatpush1.bf16.msra.mxu0 0
        %1730 = vmatprep.subr.bf16.mxu0 0
        %1731 = vmatpush1.bf16.msra.mxu0 0
        %1732 = vmatprep.subr.bf16.mxu0 0
        %1733 = vmatpush1.bf16.msra.mxu0 0
        %1734 = vmatprep.subr.bf16.mxu0 0
        %1735 = vmatpush1.bf16.msra.mxu0 0
        %1736 = vmatprep.subr.bf16.mxu0 0
        %1737 = vmatpush1.bf16.msra.mxu0 0
        %1738 = vmatprep.subr.bf16.mxu0 0
        %1739 = vmatpush1.bf16.msra.mxu0 0
        %1740 = vmatprep.subr.bf16.mxu0 0
        %1741 = vmatpush1.bf16.msra.mxu0 0
        %1742 = vmatprep.mubr.bf16.mxu0 0
        %1743 = vmatmul.mubr.bf16.gmra.mrb[0].mxu0 %v1708
        %v1744 = vpop.f32.mrb[0].mxu0
        %v1745 = vadd.f32 %v1630, %v1744
        %v1746 = vpop.f32.mrb[0].mxu0
        %v1747 = vadd.f32 %v1634, %v1746
        %v1748 = vpop.f32.mrb[0].mxu0
        %v1749 = vpop.f32.mrb[0].mxu0
        %1750 = vdwg.mxu0
        %1751 = vmatprep.subr.bf16.mxu0 0
        %1752 = vmatpush1.bf16.msra.mxu0 %v1684
        %1753 = vmatprep.subr.bf16.mxu0 0
        %1754 = vmatpush1.bf16.msra.mxu0 %v1687
        %1755 = vmatprep.subr.bf16.mxu0 0
        %1756 = vmatpush1.bf16.msra.mxu0 %v1690
        %1757 = vmatprep.subr.bf16.mxu0 0
        %1758 = vmatpush1.bf16.msra.mxu0 %v1693
        %1759 = vmatprep.subr.bf16.mxu0 0
        %1760 = vmatpush1.bf16.msra.mxu0 0
        %1761 = vmatprep.subr.bf16.mxu0 0
        %1762 = vmatpush1.bf16.msra.mxu0 0
        %1763 = vmatprep.subr.bf16.mxu0 0
        %1764 = vmatpush1.bf16.msra.mxu0 0
        %1765 = vmatprep.subr.bf16.mxu0 0
        %1766 = vmatpush1.bf16.msra.mxu0 0
        %1767 = vmatprep.subr.bf16.mxu0 0
        %1768 = vmatpush1.bf16.msra.mxu0 0
        %1769 = vmatprep.subr.bf16.mxu0 0
        %1770 = vmatpush1.bf16.msra.mxu0 0
        %1771 = vmatprep.subr.bf16.mxu0 0
        %1772 = vmatpush1.bf16.msra.mxu0 0
        %1773 = vmatprep.subr.bf16.mxu0 0
        %1774 = vmatpush1.bf16.msra.mxu0 0
        %1775 = vmatprep.subr.bf16.mxu0 0
        %1776 = vmatpush1.bf16.msra.mxu0 0
        %1777 = vmatprep.subr.bf16.mxu0 0
        %1778 = vmatpush1.bf16.msra.mxu0 0
        %1779 = vmatprep.subr.bf16.mxu0 0
        %1780 = vmatpush1.bf16.msra.mxu0 0
        %1781 = vmatprep.subr.bf16.mxu0 0
        %1782 = vmatpush1.bf16.msra.mxu0 0
        %1783 = vmatprep.mubr.bf16.mxu0 0
        %1784 = vmatmul.mubr.bf16.gmra.mrb[0].mxu0 %v1708
        %v1785 = vpop.f32.mrb[0].mxu0
        %v1786 = vadd.f32 %v1638, %v1785
        %v1787 = vpop.f32.mrb[0].mxu0
        %v1788 = vpop.f32.mrb[0].mxu0
        %v1789 = vpop.f32.mrb[0].mxu0
        %1790 = vdwg.mxu0
        %1791 = vst [vmem:[%s190] sm:$0xff] %v1745
        %1792 = vst [vmem:[%s190 + $0x8] sm:$0xff] %v1747
        %1793 = vst [vmem:[%s190 + $0x10] sm:$0xff] %v1786
        %s1794 = sand.u32 %s115, 1
        %s1795 = scalar_lea.sflag [#allocation3], %s1794
        %s1796 = sand.u32 %s115, 1
        %s1797 = smul.addr %s1796, 24
        %s1798 = scalar_lea.vmem [#allocation2], %s1797
        // Predicated region
        $region37: #{tpu_custom_call.1} parent=35 // pred_check
          %p1799 = pneg %p125
        $region38: #{tpu_custom_call.1} parent=35 // pred_check_branch
          %1801 = sbr.rel (%p1799) target = $region40
        $region39: #{tpu_custom_call.1} parent=35 // pred_region
          %s1803 = ssub.s32 384, 384
          %1804 = vsyncadd %s1795, %s1803
          %s1805 = smul.addr %s18, 3
          %s1806 = smul.addr %s1805, 128
          %s1807 = scalar_lea.hbm %s4, %s1806
          %s1809 = sshll.u32 %s1798, 4
          %s1810 = int_to_ptr.vmem [resolvable:$true] %s1809
          %1812 = dma.vmem_to_hbm [thread:$0]  %s1810, 384, %s1807, %s1795
        $region40: #{tpu_custom_call.1} parent=35 // pred_fallthru
          _
      $region36: #{tpu_custom_call.1} parent=5 // pred_fallthru
        _
      %p1813 = scmp.le.s32.totalorder 2, %s13
      // Predicated region
      $region41: #{tpu_custom_call.1} parent=5 // pred_check
        %p1814 = pneg %p1813
      $region42: #{tpu_custom_call.1} parent=5 // pred_check_branch
        %1816 = sbr.rel (%p1814) target = $region44
      $region43: #{tpu_custom_call.1} parent=5 // pred_region
        %s1817 = ssub.s32 %s13, 2
        // Predicated region
        $region45: #{tpu_custom_call.1} parent=43 // pred_check
          %p1818 = pneg %p131
        $region46: #{tpu_custom_call.1} parent=43 // pred_check_branch
          %1820 = sbr.rel (%p1818) target = $region48
        $region47: #{tpu_custom_call.1} parent=43 // pred_region
          %s1821 = sand.u32 %s116, 1
          %s1822 = scalar_lea.sflag [#allocation3], %s1821
          %s1823 = sand.u32 %s116, 1
          %s1824 = smul.addr %s1823, 24
          %s1825 = scalar_lea.vmem [#allocation2], %s1824
          %1826 = dma.done %s1822, 384
        $region48: #{tpu_custom_call.1} parent=43 // pred_fallthru
          _
      $region44: #{tpu_custom_call.1} parent=5 // pred_fallthru
        _
    $region6: #{tpu_custom_call.1} parent=1 // loop_footer
      %s17 = sadd.s32 1, %s13
    $region7: #{tpu_custom_call.1} parent=1 // loop_footer_branch
      %12 = sbr.rel target = $region3
    $region8: #{tpu_custom_call.1} parent=1 // loop_exit
      _
    %1827 = vsyncpa [#allocation3], 1
    %s1828 = scalar_lea.sflag [#allocation3], 1
    %1829 = vsyncpa %s1828, 1

</llo_original>
